<compile_context>
chip_gen: v6e
topology: v6e:2x2x1
jax: 0.10.0
libtpu: 0.0.40
codegen_flags: <defaults>
</compile_context>

<pallas_src>
import math
import functools

import jax
import jax.numpy as jnp
from jax import lax
from jax.experimental import pallas as pl
from jax.experimental.pallas import tpu as pltpu


# Safe on every generation (v7x has 64 MiB physical VMEM per TensorCore).
_VMEM_LIMIT_BYTES = 48 * 1024 * 1024


def _pick_tile(dim: int, preferred: int) -> int:
    """Largest tile <= preferred that divides dim exactly (falls back to dim)."""
    if dim <= preferred:
        return dim
    t = preferred
    while t > 1 and dim % t != 0:
        t //= 2
    return t if dim % t == 0 else dim


# ---------------------------------------------------------------------------
# Kernel 1: (batched) tiled linear   y[g] = x[g] @ W[g]^T + b[g]
#           outputs are concatenated along the feature axis -> [M, G*D_out]
# ---------------------------------------------------------------------------
def _matmul_bias_kernel(x_ref, w_ref, b_ref, o_ref, acc_ref):
    k = pl.program_id(3)

    @pl.when(k == 0)
    def _():
        acc_ref[...] = jnp.zeros_like(acc_ref)

    # x @ W^T without materializing a transpose: contract the D_in axes
    # directly (W stays in its native PyTorch [D_out, D_in] layout).
    acc_ref[...] += lax.dot_general(
        x_ref[0], w_ref[0],
        dimension_numbers=(((1,), (1,)), ((), ())),
        preferred_element_type=jnp.float32)

    @pl.when(k == pl.num_programs(3) - 1)
    def _():
        o_ref[...] = (acc_ref[...] + b_ref[0]).astype(o_ref.dtype)


def batched_linear(x, w, b, *, tm=512, tn=512, tk=512):
    """x: [G, M, D_in], w: [G, D_out, D_in], b: [G, D_out] -> [M, G*D_out].

    For each g, computes x[g] @ w[g]^T + b[g]; results are laid out side by
    side along the feature axis (lane-dense output slab).
    """
    G, M, Din = x.shape
    Dout = w.shape[1]
    tm = _pick_tile(M, tm)
    tn = _pick_tile(Dout, tn)
    tk = _pick_tile(Din, tk)
    n_j = Dout // tn
    grid = (G, M // tm, n_j, Din // tk)
    b3 = b.reshape(G, 1, Dout)

    return pl.pallas_call(
        _matmul_bias_kernel,
        out_shape=jax.ShapeDtypeStruct((M, G * Dout), x.dtype),
        grid_spec=pltpu.PrefetchScalarGridSpec(
            num_scalar_prefetch=0,
            grid=grid,
            in_specs=[
                pl.BlockSpec((1, tm, tk), lambda g, i, j, k: (g, i, k)),
                pl.BlockSpec((1, tn, tk), lambda g, i, j, k: (g, j, k)),
                pl.BlockSpec((1, 1, tn), lambda g, i, j, k: (g, 0, j)),
            ],
            out_specs=pl.BlockSpec((tm, tn), lambda g, i, j, k: (i, g * n_j + j)),
            scratch_shapes=[pltpu.VMEM((tm, tn), jnp.float32)],
        ),
        compiler_params=pltpu.CompilerParams(
            dimension_semantics=("parallel", "parallel", "parallel", "arbitrary"),
            vmem_limit_bytes=_VMEM_LIMIT_BYTES),
        cost_estimate=pl.CostEstimate(
            flops=2 * G * M * Dout * Din,
            transcendentals=0,
            bytes_accessed=int(
                (x.size + w.size + b.size + M * G * Dout) * x.dtype.itemsize)),
    )(x, w, b3)


# ---------------------------------------------------------------------------
# Kernel 2: flash-style attention reading heads straight from the [B, S, 3D]
#           projection slab and writing combined-head [B, S, D] output.
# ---------------------------------------------------------------------------
def _flash_attention_kernel(q_ref, k_ref, v_ref, o_ref, m_ref, l_ref, acc_ref,
                            *, scale):
    ki = pl.program_id(3)

    @pl.when(ki == 0)
    def _():
        m_ref[...] = jnp.full_like(m_ref, -jnp.inf)
        l_ref[...] = jnp.zeros_like(l_ref)
        acc_ref[...] = jnp.zeros_like(acc_ref)

    # Fold 1/sqrt(hd) into Q (tq*hd multiplies instead of tq*tk on the scores).
    q = q_ref[0] * scale                                    # [tq, hd]
    k = k_ref[0]                                            # [tk, hd]
    v = v_ref[0]                                            # [tk, hd]

    # Q K^T without an explicit transpose: contract the head_dim axes.
    s = lax.dot_general(q, k, (((1,), (1,)), ((), ())),
                        preferred_element_type=jnp.float32)  # [tq, tk]

    # Online (streaming) softmax over kv blocks.
    m_prev = m_ref[...]
    m_new = jnp.maximum(m_prev, jnp.max(s, axis=-1, keepdims=True))
    alpha = jnp.exp(m_prev - m_new)
    p = jnp.exp(s - m_new)
    l_ref[...] = alpha * l_ref[...] + jnp.sum(p, axis=-1, keepdims=True)
    acc_ref[...] = alpha * acc_ref[...] + jnp.dot(
        p.astype(v.dtype), v, preferred_element_type=jnp.float32)
    m_ref[...] = m_new

    @pl.when(ki == pl.num_programs(3) - 1)
    def _():
        inv_l = pl.reciprocal(l_ref[...], approx=True)       # EUP slot, ~free
        o_ref[0] = (acc_ref[...] * inv_l).astype(o_ref.dtype)


def flash_attention(qkv, num_heads, head_dim, *, tq=512, tk=512):
    """qkv: [B, S, 3*D] laid out as [q_heads | k_heads | v_heads]
    -> combined-head output [B, S, D]."""
    B, S, three_d = qkv.shape
    D = num_heads * head_dim
    assert three_d == 3 * D
    tq = _pick_tile(S, tq)
    tk = _pick_tile(S, tk)
    grid = (B, num_heads, S // tq, S // tk)
    scale = 1.0 / math.sqrt(head_dim)

    # Heads are sliced out of the feature axis by the index maps (block width =
    # head_dim), so no reshape/transpose HBM round trips are needed.
    # TODO(synk): for head_dim < 128, pack multiple heads per block to keep the
    # last block dim lane-dense (a multiple of 128).
    q_spec = pl.BlockSpec((1, tq, head_dim),
                          lambda b, h, qi, ki: (b, qi, h))
    k_spec = pl.BlockSpec((1, tk, head_dim),
                          lambda b, h, qi, ki: (b, ki, num_heads + h))
    v_spec = pl.BlockSpec((1, tk, head_dim),
                          lambda b, h, qi, ki: (b, ki, 2 * num_heads + h))
    o_spec = pl.BlockSpec((1, tq, head_dim),
                          lambda b, h, qi, ki: (b, qi, h))

    return pl.pallas_call(
        functools.partial(_flash_attention_kernel, scale=scale),
        out_shape=jax.ShapeDtypeStruct((B, S, D), qkv.dtype),
        grid_spec=pltpu.PrefetchScalarGridSpec(
            num_scalar_prefetch=0,
            grid=grid,
            in_specs=[q_spec, k_spec, v_spec],
            out_specs=o_spec,
            scratch_shapes=[
                pltpu.VMEM((tq, 1), jnp.float32),         # running max
                pltpu.VMEM((tq, 1), jnp.float32),         # running denom
                pltpu.VMEM((tq, head_dim), jnp.float32),  # output accumulator
            ],
        ),
        compiler_params=pltpu.CompilerParams(
            dimension_semantics=("parallel", "parallel", "parallel", "arbitrary"),
            vmem_limit_bytes=_VMEM_LIMIT_BYTES),
        cost_estimate=pl.CostEstimate(
            flops=4 * B * num_heads * S * S * head_dim,
            transcendentals=B * num_heads * S * S,
            bytes_accessed=int(2 * qkv.size * qkv.dtype.itemsize)),
    )(qkv, qkv, qkv)


# ---------------------------------------------------------------------------
# MultiHeadAttention wrapper (no transposes in plain JAX, only reshapes)
# ---------------------------------------------------------------------------
class MultiHeadAttention:
    def __init__(self, model_dim: int, num_attention_heads: int, key):
        assert model_dim % num_attention_heads == 0
        self.model_dim = model_dim
        self.num_heads = num_attention_heads
        self.head_dim = model_dim // num_attention_heads

        # Deterministic init mimicking nn.Linear default
        # (uniform in [-1/sqrt(fan_in), 1/sqrt(fan_in)]).
        def init_linear(k, out_dim, in_dim):
            kw, kb = jax.random.split(k)
            bound = 1.0 / math.sqrt(in_dim)
            w = jax.random.uniform(kw, (out_dim, in_dim), jnp.float32, -bound, bound)
            b = jax.random.uniform(kb, (out_dim,), jnp.float32, -bound, bound)
            return w, b

        k1, k2, k3, k4 = jax.random.split(key, 4)
        self.Wq, self.bq = init_linear(k1, model_dim, model_dim)
        self.Wk, self.bk = init_linear(k2, model_dim, model_dim)
        self.Wv, self.bv = init_linear(k3, model_dim, model_dim)
        self.Wo, self.bo = init_linear(k4, model_dim, model_dim)

        # Pre-fused / pre-stacked static parameters (built once, outside kernels).
        self.Wqkv_fused = jnp.concatenate([self.Wq, self.Wk, self.Wv], axis=0)  # [3D, D]
        self.bqkv_fused = jnp.concatenate([self.bq, self.bk, self.bv], axis=0)  # [3D]
        self.Wqkv_stack = jnp.stack([self.Wq, self.Wk, self.Wv], axis=0)        # [3, D, D]
        self.bqkv_stack = jnp.stack([self.bq, self.bk, self.bv], axis=0)        # [3, D]

    def __call__(self, Q, K, V):
        B, S, D = Q.shape
        if (Q is K) and (K is V):
            # Self-attention: one fused [M, D] @ [D, 3D] projection.
            qkv = batched_linear(Q.reshape(1, B * S, D),
                                 self.Wqkv_fused[None],
                                 self.bqkv_fused[None])
        else:
            # Distinct Q/K/V: one batched projection over stacked inputs/weights.
            x = jnp.stack([Q.reshape(B * S, D),
                           K.reshape(B * S, D),
                           V.reshape(B * S, D)], axis=0)
            qkv = batched_linear(x, self.Wqkv_stack, self.bqkv_stack)
        qkv = qkv.reshape(B, S, 3 * D)                 # [q_heads | k_heads | v_heads]

        attn = flash_attention(qkv, self.num_heads, self.head_dim)   # [B, S, D]

        out = batched_linear(attn.reshape(1, B * S, D),
                             self.Wo[None], self.bo[None])
        return out.reshape(B, S, D)


# ---------------------------------------------------------------------------
# Pure-JAX reference for a sanity check
# ---------------------------------------------------------------------------
def reference_mha(mha, Q, K, V):
    def proj(x, w, b):
        return x @ w.T + b

    B, S, D = Q.shape
    H, hd = mha.num_heads, mha.head_dim
    q = proj(Q, mha.Wq, mha.bq).reshape(B, S, H, hd).transpose(0, 2, 1, 3)
    k = proj(K, mha.Wk, mha.bk).reshape(B, S, H, hd).transpose(0, 2, 1, 3)
    v = proj(V, mha.Wv, mha.bv).reshape(B, S, H, hd).transpose(0, 2, 1, 3)
    s = jnp.einsum("bhqd,bhkd->bhqk", q, k) / math.sqrt(hd)
    p = jax.nn.softmax(s, axis=-1)
    o = jnp.einsum("bhqk,bhkd->bhqd", p, v)
    o = o.transpose(0, 2, 1, 3).reshape(B, S, D)
    return proj(o, mha.Wo, mha.bo)


if __name__ == "__main__":
    # Small but hardware-aligned shapes: head_dim = 128 (lane-dense blocks).
    batch, seq, model_dim, num_heads = 2, 128, 256, 2

    key = jax.random.PRNGKey(0)
    kp, kq, kk, kv = jax.random.split(key, 4)

    mha = MultiHeadAttention(model_dim, num_heads, kp)

    Q = jax.random.normal(kq, (batch, seq, model_dim), jnp.float32)
    K = jax.random.normal(kk, (batch, seq, model_dim), jnp.float32)
    V = jax.random.normal(kv, (batch, seq, model_dim), jnp.float32)

    # General path (distinct Q/K/V), matching the module's forward(Q, K, V).
    out = jax.block_until_ready(mha(Q, K, V))
    ref = reference_mha(mha, Q, K, V)
    assert out.shape == (batch, seq, model_dim)
    err = float(jnp.max(jnp.abs(out - ref)))
    assert jnp.allclose(out, ref, atol=2e-3, rtol=2e-3), f"max abs err = {err}"

    print("KERNEL_OK")
</pallas_src>

<mosaic_0001>
module attributes {stable_mosaic.version = 11 : i64} {
  func.func @_matmul_bias_kernel(%arg0: i32, %arg1: i32, %arg2: i32, %arg3: i32, %arg4: memref<1x256x256xf32, #tpu.memory_space<vmem>>, %arg5: memref<1x256x256xf32, #tpu.memory_space<vmem>>, %arg6: memref<1x1x256xf32, #tpu.memory_space<vmem>>, %arg7: memref<256x256xf32, #tpu.memory_space<vmem>>, %arg8: memref<256x256xf32, #tpu.memory_space<vmem>>) attributes {dimension_semantics = [#tpu.dimension_semantics<parallel>, #tpu.dimension_semantics<parallel>, #tpu.dimension_semantics<parallel>, #tpu.dimension_semantics<arbitrary>], iteration_bounds = array<i64: 3, 1, 1, 1>, scalar_prefetch = 0 : i64, scratch_operands = 1 : i64, tpu.core_type = #tpu.core_type<tc>, window_params = [{transform_indices = @transform_0, window_bounds = array<i64: 1, 256, 256>}, {transform_indices = @transform_1, window_bounds = array<i64: 1, 256, 256>}, {transform_indices = @transform_2, window_bounds = array<i64: 1, 1, 256>}, {transform_indices = @transform_3, window_bounds = array<i64: 256, 256>}]} {
    %c0_i32 = arith.constant 0 : i32
    %0 = arith.cmpi eq, %arg3, %c0_i32 : i32
    %1 = arith.extui %0 : i1 to i32
    %c0_i32_0 = arith.constant 0 : i32
    %2 = arith.cmpi ne, %1, %c0_i32_0 : i32
    scf.if %2 {
      %cst_12 = arith.constant 0.000000e+00 : f32
      %14 = vector.broadcast %cst_12 : f32 to vector<256x256xf32>
      %c0_13 = arith.constant 0 : index
      %c0_14 = arith.constant 0 : index
      %15 = vector.load %arg8[%c0_13, %c0_14] : memref<256x256xf32, #tpu.memory_space<vmem>>, vector<256x256xf32>
      tpu.vector_store %arg8[%c0_13, %c0_14], %14 {strides = array<i32>} : memref<256x256xf32, #tpu.memory_space<vmem>>, vector<256x256xf32>,
    } else {
    }
    %c0 = arith.constant 0 : index
    %c0_1 = arith.constant 0 : index
    %3 = vector.load %arg8[%c0, %c0_1] : memref<256x256xf32, #tpu.memory_space<vmem>>, vector<256x256xf32>
    %c0_2 = arith.constant 0 : index
    %c0_3 = arith.constant 0 : index
    %c0_4 = arith.constant 0 : index
    %4 = vector.load %arg4[%c0_2, %c0_3, %c0_4] : memref<1x256x256xf32, #tpu.memory_space<vmem>>, vector<1x256x256xf32>
    %5 = vector.shape_cast %4 : vector<1x256x256xf32> to vector<256x256xf32>
    %c0_5 = arith.constant 0 : index
    %c0_6 = arith.constant 0 : index
    %c0_7 = arith.constant 0 : index
    %6 = vector.load %arg5[%c0_5, %c0_6, %c0_7] : memref<1x256x256xf32, #tpu.memory_space<vmem>>, vector<1x256x256xf32>
    %7 = vector.shape_cast %6 : vector<1x256x256xf32> to vector<256x256xf32>
    %cst = arith.constant dense<0.000000e+00> : vector<256x256xf32>
    %8 = tpu.matmul %5, %7, %cst {dimension_numbers = #tpu.dot_dimension_numbers<[1], [1], [0], [0], [0, 0, 1, 0], [], []>} : vector<256x256xf32>, vector<256x256xf32>, vector<256x256xf32> -> vector<256x256xf32>
    %9 = arith.addf %3, %8 : vector<256x256xf32>
    %c0_8 = arith.constant 0 : index
    %c0_9 = arith.constant 0 : index
    %10 = vector.load %arg8[%c0_8, %c0_9] : memref<256x256xf32, #tpu.memory_space<vmem>>, vector<256x256xf32>
    tpu.vector_store %arg8[%c0_8, %c0_9], %9 {strides = array<i32>} : memref<256x256xf32, #tpu.memory_space<vmem>>, vector<256x256xf32>,
    %c0_i32_10 = arith.constant 0 : i32
    %11 = arith.cmpi eq, %arg3, %c0_i32_10 : i32
    %12 = arith.extui %11 : i1 to i32
    %c0_i32_11 = arith.constant 0 : i32
    %13 = arith.cmpi ne, %12, %c0_i32_11 : i32
    scf.if %13 {
      %c0_12 = arith.constant 0 : index
      %c0_13 = arith.constant 0 : index
      %14 = vector.load %arg8[%c0_12, %c0_13] : memref<256x256xf32, #tpu.memory_space<vmem>>, vector<256x256xf32>
      %c0_14 = arith.constant 0 : index
      %c0_15 = arith.constant 0 : index
      %c0_16 = arith.constant 0 : index
      %15 = vector.load %arg6[%c0_14, %c0_15, %c0_16] : memref<1x1x256xf32, #tpu.memory_space<vmem>>, vector<1x1x256xf32>
      %16 = vector.shape_cast %15 : vector<1x1x256xf32> to vector<1x256xf32>
      %17 = vector.broadcast %16 : vector<1x256xf32> to vector<256x256xf32>
      %18 = arith.addf %14, %17 : vector<256x256xf32>
      %c0_17 = arith.constant 0 : index
      %c0_18 = arith.constant 0 : index
      %19 = vector.load %arg7[%c0_17, %c0_18] : memref<256x256xf32, #tpu.memory_space<vmem>>, vector<256x256xf32>
      tpu.vector_store %arg7[%c0_17, %c0_18], %18 {strides = array<i32>} : memref<256x256xf32, #tpu.memory_space<vmem>>, vector<256x256xf32>,
    } else {
    }
    return
  }
  func.func @transform_0(%arg0: i32, %arg1: i32, %arg2: i32, %arg3: i32) -> (i32, i32, i32) {
    %c0_i32 = arith.constant 0 : i32
    return %arg0, %arg1, %arg3 : i32, i32, i32
  }
  func.func @transform_1(%arg0: i32, %arg1: i32, %arg2: i32, %arg3: i32) -> (i32, i32, i32) {
    %c0_i32 = arith.constant 0 : i32
    return %arg0, %arg2, %arg3 : i32, i32, i32
  }
  func.func @transform_2(%arg0: i32, %arg1: i32, %arg2: i32, %arg3: i32) -> (i32, i32, i32) {
    %c0_i32 = arith.constant 0 : i32
    %c0_i32_0 = arith.constant 0 : i32
    return %arg0, %c0_i32, %arg2 : i32, i32, i32
  }
  func.func @transform_3(%arg0: i32, %arg1: i32, %arg2: i32, %arg3: i32) -> (i32, i32) {
    %c1_i32 = arith.constant 1 : i32
    %0 = arith.muli %arg0, %c1_i32 : i32
    %1 = arith.addi %0, %arg2 : i32
    %c0_i32 = arith.constant 0 : i32
    return %arg1, %1 : i32, i32
  }
}

</mosaic_0001>

<llo_original>
// kernel: tpu_custom_call.1
$region0: #{tpu_custom_call.1}
  #allocation0 [shape = 'u32[]', space=smem, size = 0x4, offset = 0x4, fixed_abs, tag = 'smem constant byte address 0x4 - core index']
  #allocation1 [shape = 'u32[144,128]{1,0:T(1,128)}', space=vmem, size = 0x12000, scoped, tag = 'internal scratch']
  #allocation2 [shape = 'f32[256,256]{1,0:T(8,128)}', space=vmem, size = 0x40000, scoped, tag = 'scratch operand']
  %s0 = inlined_call_operand.hbm [shape: f32[3,256,256], index: 0, kind: input, shape index: {}]
  %s1 = inlined_call_operand.hbm [shape: f32[3,256,256], index: 1, kind: input, shape index: {}]
  %s2 = inlined_call_operand.hbm [shape: f32[3,1,256], index: 2, kind: input, shape index: {}]
  %s3 = inlined_call_operand.hbm [shape: f32[256,768], index: 3, kind: output, shape index: {}]
  %s4 = sld [smem:[#allocation0]]
  $region65: #{tpu_custom_call.1} parent=0
    _
  %s6 = ssub.s32 1, %s4
  %s7 = scalar_select 0, %s6, %s4
  $region1: #{tpu_custom_call.1} parent=0
    #allocation3 [shape = 'u8[524288]{0}', space=vmem, size = 0x80000, scoped, tag = 'input window, operand 0']
    #allocation4 [shape = 's32[2]{0}', space=sflag, size = 0x8, scoped, tag = 'scoped memory for tpu_custom_call.1']
    #allocation5 [shape = 's32[2]{0}', space=sflag, size = 0x8, scoped, tag = 'scoped memory for tpu_custom_call.1']
    #allocation6 [shape = 'u8[524288]{0}', space=vmem, size = 0x80000, scoped, tag = 'input window, operand 1']
    #allocation7 [shape = 's32[2]{0}', space=sflag, size = 0x8, scoped, tag = 'scoped memory for tpu_custom_call.1']
    #allocation8 [shape = 'u8[2048]{0}', space=vmem, size = 0x800, scoped, tag = 'input window, operand 2']
    #allocation9 [shape = 'u8[524288]{0}', space=vmem, size = 0x80000, scoped, tag = 'output window, operand 0']
    %8 = vsyncpa [#allocation4], 0
    %s9 = scalar_lea.sflag [#allocation4], 1
    %10 = vsyncpa %s9, 0
    %11 = vsyncpa [#allocation7], 0
    %s12 = scalar_lea.sflag [#allocation7], 1
    %13 = vsyncpa %s12, 0
    %14 = vsyncpa [#allocation5], 0
    %s15 = scalar_lea.sflag [#allocation5], 1
    %16 = vsyncpa %s15, 0
    loop: start=0, step=1, limit=5
    $region2: #{tpu_custom_call.1} parent=1 // loop_pre_header
      _
    $region3: #{tpu_custom_call.1} parent=1 // loop_header
      %s18 = sphi 0, %s22
      %p19 = scmp.ge.s32.totalorder %s18, 5
      %s25 = sphi 0, %s51
      %s26 = sphi 0, %s47
      %s27 = sphi 0, %s43
      %s28 = sphi 0, %s39
      %s29 = sphi 0, %s25
      %s30 = sphi 0, %s26
      %s31 = sphi 0, %s27
      %s32 = sphi 0, %s28
      %s33 = sphi 0, %s29
      %s34 = sphi 0, %s30
      %s35 = sphi 0, %s31
      %s36 = sphi 0, %s32
      %s58 = sphi 0, %s60
      %s61 = sphi 0, %s58
      %s62 = sphi 0, %s61
      %s78 = sphi 0, %s62
      %s88 = sphi 0, %s90
      %s91 = sphi 0, %s88
      %s92 = sphi 0, %s91
      %s108 = sphi 0, %s92
      %s116 = sphi 0, %s118
      %s119 = sphi 0, %s116
      %s120 = sphi 0, %s119
      %s136 = sphi 0, %s120
      %s146 = sphi 0, %s148
      %s149 = sphi 0, %s146
      %s150 = sphi 0, %s149
      %s166 = sphi 0, %s150
    $region4: #{tpu_custom_call.1} parent=1 // loop_header_branch
      %21 = sbr.rel (%p19) target = $region8
    $region5: #{tpu_custom_call.1} parent=1 // loop_body
      %s23 = ssub.s32 %s18, 1
      %s24 = ssub.s32 %s18, 2
      %s37 = sadd.s32 1, %s28
      %p38 = scmp.ge.s32.totalorder %s37, 1
      %s39 = scalar_select %p38, 0, %s37
      %s40 = sadd.s32 1, %s27
      %s41 = scalar_select %p38, %s40, %s27
      %p42 = scmp.ge.s32.totalorder %s41, 1
      %s43 = scalar_select %p42, 0, %s41
      %s44 = sadd.s32 1, %s26
      %s45 = scalar_select %p42, %s44, %s26
      %p46 = scmp.ge.s32.totalorder %s45, 1
      %s47 = scalar_select %p46, 0, %s45
      %s48 = sadd.s32 1, %s25
      %s49 = scalar_select %p46, %s48, %s25
      %p50 = scmp.ge.s32.totalorder %s49, 3
      %s51 = scalar_select %p50, 0, %s49
      %s52 = ssub.s32 %s25, %s51
      %s53 = ssub.s32 %s26, %s47
      %s54 = sor.u32 %s52, %s53
      %s55 = ssub.s32 %s28, %s39
      %s56 = sor.u32 %s54, %s55
      %p57 = scmp.eq.s32.totalorder %s56, 0
      %s59 = sadd.s32 %s58, 1
      %s60 = scalar_select %p57, %s58, %s59
      %p63 = pneg %p57
      %p64 = scmp.eq.s32.totalorder %s18, 2
      %p65 = por %p63, %p64
      %p66 = scmp.ne.s32.totalorder %s58, %s61
      %p67 = scmp.eq.s32.totalorder %s18, 0
      %p68 = por %p66, %p67
      %p69 = scmp.ne.s32.totalorder %s58, %s61
      %p70 = scmp.eq.s32.totalorder %s23, 2
      %p71 = por %p69, %p70
      %p72 = scmp.ne.s32.totalorder %s61, %s62
      %p73 = scmp.eq.s32.totalorder %s23, 0
      %p74 = por %p72, %p73
      %p75 = scmp.ne.s32.totalorder %s61, %s62
      %p76 = scmp.eq.s32.totalorder %s24, 2
      %p77 = por %p75, %p76
      %p79 = scmp.ne.s32.totalorder %s62, %s78
      %p80 = scmp.eq.s32.totalorder %s24, 0
      %p81 = por %p79, %p80
      %s82 = ssub.s32 %s25, %s51
      %s83 = ssub.s32 %s27, %s43
      %s84 = sor.u32 %s82, %s83
      %s85 = ssub.s32 %s28, %s39
      %s86 = sor.u32 %s84, %s85
      %p87 = scmp.eq.s32.totalorder %s86, 0
      %s89 = sadd.s32 %s88, 1
      %s90 = scalar_select %p87, %s88, %s89
      %p93 = pneg %p87
      %p94 = scmp.eq.s32.totalorder %s18, 2
      %p95 = por %p93, %p94
      %p96 = scmp.ne.s32.totalorder %s88, %s91
      %p97 = scmp.eq.s32.totalorder %s18, 0
      %p98 = por %p96, %p97
      %p99 = scmp.ne.s32.totalorder %s88, %s91
      %p100 = scmp.eq.s32.totalorder %s23, 2
      %p101 = por %p99, %p100
      %p102 = scmp.ne.s32.totalorder %s91, %s92
      %p103 = scmp.eq.s32.totalorder %s23, 0
      %p104 = por %p102, %p103
      %p105 = scmp.ne.s32.totalorder %s91, %s92
      %p106 = scmp.eq.s32.totalorder %s24, 2
      %p107 = por %p105, %p106
      %p109 = scmp.ne.s32.totalorder %s92, %s108
      %p110 = scmp.eq.s32.totalorder %s24, 0
      %p111 = por %p109, %p110
      %s112 = ssub.s32 %s25, %s51
      %s113 = ssub.s32 %s27, %s43
      %s114 = sor.u32 %s112, %s113
      %p115 = scmp.eq.s32.totalorder %s114, 0
      %s117 = sadd.s32 %s116, 1
      %s118 = scalar_select %p115, %s116, %s117
      %p121 = pneg %p115
      %p122 = scmp.eq.s32.totalorder %s18, 2
      %p123 = por %p121, %p122
      %p124 = scmp.ne.s32.totalorder %s116, %s119
      %p125 = scmp.eq.s32.totalorder %s18, 0
      %p126 = por %p124, %p125
      %p127 = scmp.ne.s32.totalorder %s116, %s119
      %p128 = scmp.eq.s32.totalorder %s23, 2
      %p129 = por %p127, %p128
      %p130 = scmp.ne.s32.totalorder %s119, %s120
      %p131 = scmp.eq.s32.totalorder %s23, 0
      %p132 = por %p130, %p131
      %p133 = scmp.ne.s32.totalorder %s119, %s120
      %p134 = scmp.eq.s32.totalorder %s24, 2
      %p135 = por %p133, %p134
      %p137 = scmp.ne.s32.totalorder %s120, %s136
      %p138 = scmp.eq.s32.totalorder %s24, 0
      %p139 = por %p137, %p138
      %s140 = sadd.s32 %s25, %s27
      %s141 = sadd.s32 %s51, %s43
      %s142 = ssub.s32 %s26, %s47
      %s143 = ssub.s32 %s140, %s141
      %s144 = sor.u32 %s142, %s143
      %p145 = scmp.eq.s32.totalorder %s144, 0
      %s147 = sadd.s32 %s146, 1
      %s148 = scalar_select %p145, %s146, %s147
      %p151 = pneg %p145
      %p152 = scmp.eq.s32.totalorder %s18, 2
      %p153 = por %p151, %p152
      %p154 = scmp.ne.s32.totalorder %s146, %s149
      %p155 = scmp.eq.s32.totalorder %s18, 0
      %p156 = por %p154, %p155
      %p157 = scmp.ne.s32.totalorder %s146, %s149
      %p158 = scmp.eq.s32.totalorder %s23, 2
      %p159 = por %p157, %p158
      %p160 = scmp.ne.s32.totalorder %s149, %s150
      %p161 = scmp.eq.s32.totalorder %s23, 0
      %p162 = por %p160, %p161
      %p163 = scmp.ne.s32.totalorder %s149, %s150
      %p164 = scmp.eq.s32.totalorder %s24, 2
      %p165 = por %p163, %p164
      %p167 = scmp.ne.s32.totalorder %s150, %s166
      %p168 = scmp.eq.s32.totalorder %s24, 0
      %p169 = por %p167, %p168
      %p170 = scmp.le.s32.totalorder 1, %s18
      %p171 = scmp.lt.s32.totalorder %s18, 4
      %p172 = pnand %p170, %p171
      %p173 = pneg %p172
      // Predicated region
      $region9: #{tpu_custom_call.1} parent=5 // pred_check
        _
      $region10: #{tpu_custom_call.1} parent=5 // pred_check_branch
        %175 = sbr.rel (%p172) target = $region12
      $region11: #{tpu_custom_call.1} parent=5 // pred_region
        %s176 = ssub.s32 %s18, 1
      $region12: #{tpu_custom_call.1} parent=5 // pred_fallthru
        _
      %p177 = scmp.lt.s32.totalorder %s18, 3
      // Predicated region
      $region13: #{tpu_custom_call.1} parent=5 // pred_check
        %p178 = pneg %p177
      $region14: #{tpu_custom_call.1} parent=5 // pred_check_branch
        %180 = sbr.rel (%p178) target = $region16
      $region15: #{tpu_custom_call.1} parent=5 // pred_region
        // Predicated region
        $region17: #{tpu_custom_call.1} parent=15 // pred_check
          %p181 = pneg %p68
        $region18: #{tpu_custom_call.1} parent=15 // pred_check_branch
          %183 = sbr.rel (%p181) target = $region20
        $region19: #{tpu_custom_call.1} parent=15 // pred_region
          %s184 = sand.u32 %s58, 1
          %s185 = scalar_lea.sflag [#allocation4], %s184
          %s186 = sand.u32 %s58, 1
          %s187 = smul.addr %s186, 512
          %s188 = scalar_lea.vmem [#allocation3], %s187
          %s189 = smul.u32 32, %s26
          %s190 = smul.u32 2, %s28
          %s192 = ssub.s32 8192, 8192
          %193 = vsyncadd %s185, %s192
          %s194 = smul.addr %s189, 2
          %s195 = sadd.s32 %s190, %s194
          %s196 = smul.addr %s25, 64
          %s197 = sadd.s32 %s195, %s196
          %s198 = smul.addr %s197, 128
          %s199 = scalar_lea.hbm %s0, %s198
          %s200 = sshll.u32 %s188, 4
          %s201 = int_to_ptr.vmem [resolvable:$true] %s200
          %206 = dma.hbm_to_vmem [thread:$0]  %s199, 8192, %s201, %s185, 256, 256, 16
        $region20: #{tpu_custom_call.1} parent=15 // pred_fallthru
          _
        // Predicated region
        $region21: #{tpu_custom_call.1} parent=15 // pred_check
          %p207 = pneg %p98
        $region22: #{tpu_custom_call.1} parent=15 // pred_check_branch
          %209 = sbr.rel (%p207) target = $region24
        $region23: #{tpu_custom_call.1} parent=15 // pred_region
          %s210 = sand.u32 %s18, 1
          %s211 = scalar_lea.sflag [#allocation7], %s210
          %s212 = sand.u32 %s88, 1
          %s213 = smul.addr %s212, 512
          %s214 = scalar_lea.vmem [#allocation6], %s213
          %s215 = smul.u32 32, %s27
          %s216 = smul.u32 2, %s28
          %s218 = ssub.s32 8192, 8192
          %219 = vsyncadd %s211, %s218
          %s220 = smul.addr %s215, 2
          %s221 = sadd.s32 %s216, %s220
          %s222 = smul.addr %s25, 64
          %s223 = sadd.s32 %s221, %s222
          %s224 = smul.addr %s223, 128
          %s225 = scalar_lea.hbm %s1, %s224
          %s226 = sshll.u32 %s214, 4
          %s227 = int_to_ptr.vmem [resolvable:$true] %s226
          %232 = dma.hbm_to_vmem [thread:$0]  %s225, 8192, %s227, %s211, 256, 256, 16
        $region24: #{tpu_custom_call.1} parent=15 // pred_fallthru
          _
        // Predicated region
        $region25: #{tpu_custom_call.1} parent=15 // pred_check
          %p233 = pneg %p126
        $region26: #{tpu_custom_call.1} parent=15 // pred_check_branch
          %235 = sbr.rel (%p233) target = $region28
        $region27: #{tpu_custom_call.1} parent=15 // pred_region
          %s236 = sand.u32 %s18, 1
          %s237 = scalar_lea.sflag [#allocation7], %s236
          %s238 = sand.u32 %s116, 1
          %s239 = smul.addr %s238, 2
          %s240 = scalar_lea.vmem [#allocation8], %s239
          %s241 = smul.u32 2, %s27
          %s243 = ssub.s32 32, 32
          %244 = vsyncadd %s237, %s243
          %s245 = smul.addr %s25, 2
          %s246 = sadd.s32 %s241, %s245
          %s247 = smul.addr %s246, 16
          %s248 = scalar_lea.hbm %s2, %s247
          %s250 = sshll.u32 %s240, 4
          %s251 = int_to_ptr.vmem [resolvable:$true] %s250
          %253 = dma.hbm_to_vmem [thread:$0]  %s248, 32, %s251, %s237
        $region28: #{tpu_custom_call.1} parent=15 // pred_fallthru
          _
      $region16: #{tpu_custom_call.1} parent=5 // pred_fallthru
        _
      %p254 = scmp.le.s32.totalorder 1, %s18
      %p255 = scmp.lt.s32.totalorder %s18, 4
      %p256 = pnand %p254, %p255
      %p257 = pneg %p256
      // Predicated region
      $region29: #{tpu_custom_call.1} parent=5 // pred_check
        _
      $region30: #{tpu_custom_call.1} parent=5 // pred_check_branch
        %259 = sbr.rel (%p256) target = $region32
      $region31: #{tpu_custom_call.1} parent=5 // pred_region
        %s260 = ssub.s32 %s18, 1
        %s261 = sand.u32 %s61, 1
        %s262 = scalar_lea.sflag [#allocation4], %s261
        %s263 = sand.u32 %s61, 1
        %s264 = smul.addr %s263, 512
        %s265 = scalar_lea.vmem [#allocation3], %s264
        // Predicated region
        $region33: #{tpu_custom_call.1} parent=31 // pred_check
          %p266 = pneg %p74
        $region34: #{tpu_custom_call.1} parent=31 // pred_check_branch
          %268 = sbr.rel (%p266) target = $region36
        $region35: #{tpu_custom_call.1} parent=31 // pred_region
          %269 = dma.done %s262, 8192
        $region36: #{tpu_custom_call.1} parent=31 // pred_fallthru
          _
        %s270 = sand.u32 %s23, 1
        %s271 = scalar_lea.sflag [#allocation7], %s270
        %s272 = sand.u32 %s91, 1
        %s273 = smul.addr %s272, 512
        %s274 = scalar_lea.vmem [#allocation6], %s273
        // Predicated region
        $region37: #{tpu_custom_call.1} parent=31 // pred_check
          %p275 = pneg %p104
        $region38: #{tpu_custom_call.1} parent=31 // pred_check_branch
          %277 = sbr.rel (%p275) target = $region40
        $region39: #{tpu_custom_call.1} parent=31 // pred_region
          %278 = dma.done %s271, 8192
        $region40: #{tpu_custom_call.1} parent=31 // pred_fallthru
          _
        %s279 = sand.u32 %s23, 1
        %s280 = scalar_lea.sflag [#allocation7], %s279
        %s281 = sand.u32 %s119, 1
        %s282 = smul.addr %s281, 2
        %s283 = scalar_lea.vmem [#allocation8], %s282
        // Predicated region
        $region41: #{tpu_custom_call.1} parent=31 // pred_check
          %p284 = pneg %p132
        $region42: #{tpu_custom_call.1} parent=31 // pred_check_branch
          %286 = sbr.rel (%p284) target = $region44
        $region43: #{tpu_custom_call.1} parent=31 // pred_region
          %287 = dma.done %s280, 32
        $region44: #{tpu_custom_call.1} parent=31 // pred_fallthru
          _
        %s288 = sand.u32 %s61, 1
        %s289 = scalar_lea.sflag [#allocation4], %s288
        %s290 = sand.u32 %s61, 1
        %s291 = smul.addr %s290, 512
        %s292 = scalar_lea.vmem [#allocation3], %s291
        %p293 = pneg %p74
        %p294 = pneg %p71
        %s295 = sand.u32 %s23, 1
        %s296 = scalar_lea.sflag [#allocation7], %s295
        %s297 = sand.u32 %s91, 1
        %s298 = smul.addr %s297, 512
        %s299 = scalar_lea.vmem [#allocation6], %s298
        %p300 = pneg %p104
        %p301 = pneg %p101
        %s302 = sand.u32 %s23, 1
        %s303 = scalar_lea.sflag [#allocation7], %s302
        %s304 = sand.u32 %s119, 1
        %s305 = smul.addr %s304, 2
        %s306 = scalar_lea.vmem [#allocation8], %s305
        %p307 = pneg %p132
        %p308 = pneg %p129
        %p309 = pneg %p162
        %p310 = pneg %p159
        %s311 = sand.u32 %s149, 1
        %s312 = scalar_lea.sflag [#allocation5], %s311
        %s313 = sand.u32 %s149, 1
        %s314 = smul.addr %s313, 512
        %s315 = scalar_lea.vmem [#allocation9], %s314
        %s316 = smul.u32 32, %s30
        %s317 = smul.u32 2, %s32
        %s318 = smul.u32 32, %s31
        %s319 = smul.u32 2, %s32
        %s320 = smul.u32 2, %s31
        %s321 = sadd.s32 %s29, %s31
        %s322 = smul.u32 32, %s30
        %s323 = smul.u32 2, %s321
        %p324 = scmp.eq.s32.totalorder %s32, 0
        // Predicated region
        $region45: #{tpu_custom_call.1} parent=31 // pred_check
          %p325 = pneg %p324
        $region46: #{tpu_custom_call.1} parent=31 // pred_check_branch
          %327 = sbr.rel (%p325) target = $region48
        $region47: #{tpu_custom_call.1} parent=31 // pred_region
          %328 = vst [vmem:[#allocation2] sm:$0xff] 0.0
          %329 = vst [vmem:[#allocation2 + $0x8] sm:$0xff] 0.0
          %330 = vst [vmem:[#allocation2 + $0x10] sm:$0xff] 0.0
          %331 = vst [vmem:[#allocation2 + $0x18] sm:$0xff] 0.0
          %332 = vst [vmem:[#allocation2 + $0x20] sm:$0xff] 0.0
          %333 = vst [vmem:[#allocation2 + $0x28] sm:$0xff] 0.0
          %334 = vst [vmem:[#allocation2 + $0x30] sm:$0xff] 0.0
          %335 = vst [vmem:[#allocation2 + $0x38] sm:$0xff] 0.0
          %336 = vst [vmem:[#allocation2 + $0x40] sm:$0xff] 0.0
          %337 = vst [vmem:[#allocation2 + $0x48] sm:$0xff] 0.0
          %338 = vst [vmem:[#allocation2 + $0x50] sm:$0xff] 0.0
          %339 = vst [vmem:[#allocation2 + $0x58] sm:$0xff] 0.0
          %340 = vst [vmem:[#allocation2 + $0x60] sm:$0xff] 0.0
          %341 = vst [vmem:[#allocation2 + $0x68] sm:$0xff] 0.0
          %342 = vst [vmem:[#allocation2 + $0x70] sm:$0xff] 0.0
          %343 = vst [vmem:[#allocation2 + $0x78] sm:$0xff] 0.0
          %344 = vst [vmem:[#allocation2 + $0x80] sm:$0xff] 0.0
          %345 = vst [vmem:[#allocation2 + $0x88] sm:$0xff] 0.0
          %346 = vst [vmem:[#allocation2 + $0x90] sm:$0xff] 0.0
          %347 = vst [vmem:[#allocation2 + $0x98] sm:$0xff] 0.0
          %348 = vst [vmem:[#allocation2 + $0xa0] sm:$0xff] 0.0
          %349 = vst [vmem:[#allocation2 + $0xa8] sm:$0xff] 0.0
          %350 = vst [vmem:[#allocation2 + $0xb0] sm:$0xff] 0.0
          %351 = vst [vmem:[#allocation2 + $0xb8] sm:$0xff] 0.0
          %352 = vst [vmem:[#allocation2 + $0xc0] sm:$0xff] 0.0
          %353 = vst [vmem:[#allocation2 + $0xc8] sm:$0xff] 0.0
          %354 = vst [vmem:[#allocation2 + $0xd0] sm:$0xff] 0.0
          %355 = vst [vmem:[#allocation2 + $0xd8] sm:$0xff] 0.0
          %356 = vst [vmem:[#allocation2 + $0xe0] sm:$0xff] 0.0
          %357 = vst [vmem:[#allocation2 + $0xe8] sm:$0xff] 0.0
          %358 = vst [vmem:[#allocation2 + $0xf0] sm:$0xff] 0.0
          %359 = vst [vmem:[#allocation2 + $0xf8] sm:$0xff] 0.0
          %360 = vst [vmem:[#allocation2 + $0x100] sm:$0xff] 0.0
          %361 = vst [vmem:[#allocation2 + $0x108] sm:$0xff] 0.0
          %362 = vst [vmem:[#allocation2 + $0x110] sm:$0xff] 0.0
          %363 = vst [vmem:[#allocation2 + $0x118] sm:$0xff] 0.0
          %364 = vst [vmem:[#allocation2 + $0x120] sm:$0xff] 0.0
          %365 = vst [vmem:[#allocation2 + $0x128] sm:$0xff] 0.0
          %366 = vst [vmem:[#allocation2 + $0x130] sm:$0xff] 0.0
          %367 = vst [vmem:[#allocation2 + $0x138] sm:$0xff] 0.0
          %368 = vst [vmem:[#allocation2 + $0x140] sm:$0xff] 0.0
          %369 = vst [vmem:[#allocation2 + $0x148] sm:$0xff] 0.0
          %370 = vst [vmem:[#allocation2 + $0x150] sm:$0xff] 0.0
          %371 = vst [vmem:[#allocation2 + $0x158] sm:$0xff] 0.0
          %372 = vst [vmem:[#allocation2 + $0x160] sm:$0xff] 0.0
          %373 = vst [vmem:[#allocation2 + $0x168] sm:$0xff] 0.0
          %374 = vst [vmem:[#allocation2 + $0x170] sm:$0xff] 0.0
          %375 = vst [vmem:[#allocation2 + $0x178] sm:$0xff] 0.0
          %376 = vst [vmem:[#allocation2 + $0x180] sm:$0xff] 0.0
          %377 = vst [vmem:[#allocation2 + $0x188] sm:$0xff] 0.0
          %378 = vst [vmem:[#allocation2 + $0x190] sm:$0xff] 0.0
          %379 = vst [vmem:[#allocation2 + $0x198] sm:$0xff] 0.0
          %380 = vst [vmem:[#allocation2 + $0x1a0] sm:$0xff] 0.0
          %381 = vst [vmem:[#allocation2 + $0x1a8] sm:$0xff] 0.0
          %382 = vst [vmem:[#allocation2 + $0x1b0] sm:$0xff] 0.0
          %383 = vst [vmem:[#allocation2 + $0x1b8] sm:$0xff] 0.0
          %384 = vst [vmem:[#allocation2 + $0x1c0] sm:$0xff] 0.0
          %385 = vst [vmem:[#allocation2 + $0x1c8] sm:$0xff] 0.0
          %386 = vst [vmem:[#allocation2 + $0x1d0] sm:$0xff] 0.0
          %387 = vst [vmem:[#allocation2 + $0x1d8] sm:$0xff] 0.0
          %388 = vst [vmem:[#allocation2 + $0x1e0] sm:$0xff] 0.0
          %389 = vst [vmem:[#allocation2 + $0x1e8] sm:$0xff] 0.0
          %390 = vst [vmem:[#allocation2 + $0x1f0] sm:$0xff] 0.0
          %391 = vst [vmem:[#allocation2 + $0x1f8] sm:$0xff] 0.0
        $region48: #{tpu_custom_call.1} parent=31 // pred_fallthru
          _
        %v392 = vld [vmem:[#allocation2] sm:$0xff]
        %v393 = vld [vmem:[#allocation2 + $0x8] sm:$0xff]
        %v394 = vld [vmem:[#allocation2 + $0x10] sm:$0xff]
        %v395 = vld [vmem:[#allocation2 + $0x18] sm:$0xff]
        %v396 = vld [vmem:[#allocation2 + $0x20] sm:$0xff]
        %v397 = vld [vmem:[#allocation2 + $0x28] sm:$0xff]
        %v398 = vld [vmem:[#allocation2 + $0x30] sm:$0xff]
        %v399 = vld [vmem:[#allocation2 + $0x38] sm:$0xff]
        %v400 = vld [vmem:[#allocation2 + $0x40] sm:$0xff]
        %v401 = vld [vmem:[#allocation2 + $0x48] sm:$0xff]
        %v402 = vld [vmem:[#allocation2 + $0x50] sm:$0xff]
        %v403 = vld [vmem:[#allocation2 + $0x58] sm:$0xff]
        %v404 = vld [vmem:[#allocation2 + $0x60] sm:$0xff]
        %v405 = vld [vmem:[#allocation2 + $0x68] sm:$0xff]
        %v406 = vld [vmem:[#allocation2 + $0x70] sm:$0xff]
        %v407 = vld [vmem:[#allocation2 + $0x78] sm:$0xff]
        %v408 = vld [vmem:[#allocation2 + $0x80] sm:$0xff]
        %v409 = vld [vmem:[#allocation2 + $0x88] sm:$0xff]
        %v410 = vld [vmem:[#allocation2 + $0x90] sm:$0xff]
        %v411 = vld [vmem:[#allocation2 + $0x98] sm:$0xff]
        %v412 = vld [vmem:[#allocation2 + $0xa0] sm:$0xff]
        %v413 = vld [vmem:[#allocation2 + $0xa8] sm:$0xff]
        %v414 = vld [vmem:[#allocation2 + $0xb0] sm:$0xff]
        %v415 = vld [vmem:[#allocation2 + $0xb8] sm:$0xff]
        %v416 = vld [vmem:[#allocation2 + $0xc0] sm:$0xff]
        %v417 = vld [vmem:[#allocation2 + $0xc8] sm:$0xff]
        %v418 = vld [vmem:[#allocation2 + $0xd0] sm:$0xff]
        %v419 = vld [vmem:[#allocation2 + $0xd8] sm:$0xff]
        %v420 = vld [vmem:[#allocation2 + $0xe0] sm:$0xff]
        %v421 = vld [vmem:[#allocation2 + $0xe8] sm:$0xff]
        %v422 = vld [vmem:[#allocation2 + $0xf0] sm:$0xff]
        %v423 = vld [vmem:[#allocation2 + $0xf8] sm:$0xff]
        %v424 = vld [vmem:[#allocation2 + $0x100] sm:$0xff]
        %v425 = vld [vmem:[#allocation2 + $0x108] sm:$0xff]
        %v426 = vld [vmem:[#allocation2 + $0x110] sm:$0xff]
        %v427 = vld [vmem:[#allocation2 + $0x118] sm:$0xff]
        %v428 = vld [vmem:[#allocation2 + $0x120] sm:$0xff]
        %v429 = vld [vmem:[#allocation2 + $0x128] sm:$0xff]
        %v430 = vld [vmem:[#allocation2 + $0x130] sm:$0xff]
        %v431 = vld [vmem:[#allocation2 + $0x138] sm:$0xff]
        %v432 = vld [vmem:[#allocation2 + $0x140] sm:$0xff]
        %v433 = vld [vmem:[#allocation2 + $0x148] sm:$0xff]
        %v434 = vld [vmem:[#allocation2 + $0x150] sm:$0xff]
        %v435 = vld [vmem:[#allocation2 + $0x158] sm:$0xff]
        %v436 = vld [vmem:[#allocation2 + $0x160] sm:$0xff]
        %v437 = vld [vmem:[#allocation2 + $0x168] sm:$0xff]
        %v438 = vld [vmem:[#allocation2 + $0x170] sm:$0xff]
        %v439 = vld [vmem:[#allocation2 + $0x178] sm:$0xff]
        %v440 = vld [vmem:[#allocation2 + $0x180] sm:$0xff]
        %v441 = vld [vmem:[#allocation2 + $0x188] sm:$0xff]
        %v442 = vld [vmem:[#allocation2 + $0x190] sm:$0xff]
        %v443 = vld [vmem:[#allocation2 + $0x198] sm:$0xff]
        %v444 = vld [vmem:[#allocation2 + $0x1a0] sm:$0xff]
        %v445 = vld [vmem:[#allocation2 + $0x1a8] sm:$0xff]
        %v446 = vld [vmem:[#allocation2 + $0x1b0] sm:$0xff]
        %v447 = vld [vmem:[#allocation2 + $0x1b8] sm:$0xff]
        %v448 = vld [vmem:[#allocation2 + $0x1c0] sm:$0xff]
        %v449 = vld [vmem:[#allocation2 + $0x1c8] sm:$0xff]
        %v450 = vld [vmem:[#allocation2 + $0x1d0] sm:$0xff]
        %v451 = vld [vmem:[#allocation2 + $0x1d8] sm:$0xff]
        %v452 = vld [vmem:[#allocation2 + $0x1e0] sm:$0xff]
        %v453 = vld [vmem:[#allocation2 + $0x1e8] sm:$0xff]
        %v454 = vld [vmem:[#allocation2 + $0x1f0] sm:$0xff]
        %v455 = vld [vmem:[#allocation2 + $0x1f8] sm:$0xff]
        %v456 = vld [vmem:[%s265] sm:$0xff]
        %v457 = vld [vmem:[%s265 + $0x8] sm:$0xff]
        %v458 = vld [vmem:[%s265 + $0x10] sm:$0xff]
        %v459 = vld [vmem:[%s265 + $0x18] sm:$0xff]
        %v460 = vld [vmem:[%s265 + $0x20] sm:$0xff]
        %v461 = vld [vmem:[%s265 + $0x28] sm:$0xff]
        %v462 = vld [vmem:[%s265 + $0x30] sm:$0xff]
        %v463 = vld [vmem:[%s265 + $0x38] sm:$0xff]
        %v464 = vld [vmem:[%s265 + $0x40] sm:$0xff]
        %v465 = vld [vmem:[%s265 + $0x48] sm:$0xff]
        %v466 = vld [vmem:[%s265 + $0x50] sm:$0xff]
        %v467 = vld [vmem:[%s265 + $0x58] sm:$0xff]
        %v468 = vld [vmem:[%s265 + $0x60] sm:$0xff]
        %v469 = vld [vmem:[%s265 + $0x68] sm:$0xff]
        %v470 = vld [vmem:[%s265 + $0x70] sm:$0xff]
        %v471 = vld [vmem:[%s265 + $0x78] sm:$0xff]
        %v472 = vld [vmem:[%s265 + $0x80] sm:$0xff]
        %v473 = vld [vmem:[%s265 + $0x88] sm:$0xff]
        %v474 = vld [vmem:[%s265 + $0x90] sm:$0xff]
        %v475 = vld [vmem:[%s265 + $0x98] sm:$0xff]
        %v476 = vld [vmem:[%s265 + $0xa0] sm:$0xff]
        %v477 = vld [vmem:[%s265 + $0xa8] sm:$0xff]
        %v478 = vld [vmem:[%s265 + $0xb0] sm:$0xff]
        %v479 = vld [vmem:[%s265 + $0xb8] sm:$0xff]
        %v480 = vld [vmem:[%s265 + $0xc0] sm:$0xff]
        %v481 = vld [vmem:[%s265 + $0xc8] sm:$0xff]
        %v482 = vld [vmem:[%s265 + $0xd0] sm:$0xff]
        %v483 = vld [vmem:[%s265 + $0xd8] sm:$0xff]
        %v484 = vld [vmem:[%s265 + $0xe0] sm:$0xff]
        %v485 = vld [vmem:[%s265 + $0xe8] sm:$0xff]
        %v486 = vld [vmem:[%s265 + $0xf0] sm:$0xff]
        %v487 = vld [vmem:[%s265 + $0xf8] sm:$0xff]
        %v488 = vld [vmem:[%s265 + $0x100] sm:$0xff]
        %v489 = vld [vmem:[%s265 + $0x108] sm:$0xff]
        %v490 = vld [vmem:[%s265 + $0x110] sm:$0xff]
        %v491 = vld [vmem:[%s265 + $0x118] sm:$0xff]
        %v492 = vld [vmem:[%s265 + $0x120] sm:$0xff]
        %v493 = vld [vmem:[%s265 + $0x128] sm:$0xff]
        %v494 = vld [vmem:[%s265 + $0x130] sm:$0xff]
        %v495 = vld [vmem:[%s265 + $0x138] sm:$0xff]
        %v496 = vld [vmem:[%s265 + $0x140] sm:$0xff]
        %v497 = vld [vmem:[%s265 + $0x148] sm:$0xff]
        %v498 = vld [vmem:[%s265 + $0x150] sm:$0xff]
        %v499 = vld [vmem:[%s265 + $0x158] sm:$0xff]
        %v500 = vld [vmem:[%s265 + $0x160] sm:$0xff]
        %v501 = vld [vmem:[%s265 + $0x168] sm:$0xff]
        %v502 = vld [vmem:[%s265 + $0x170] sm:$0xff]
        %v503 = vld [vmem:[%s265 + $0x178] sm:$0xff]
        %v504 = vld [vmem:[%s265 + $0x180] sm:$0xff]
        %v505 = vld [vmem:[%s265 + $0x188] sm:$0xff]
        %v506 = vld [vmem:[%s265 + $0x190] sm:$0xff]
        %v507 = vld [vmem:[%s265 + $0x198] sm:$0xff]
        %v508 = vld [vmem:[%s265 + $0x1a0] sm:$0xff]
        %v509 = vld [vmem:[%s265 + $0x1a8] sm:$0xff]
        %v510 = vld [vmem:[%s265 + $0x1b0] sm:$0xff]
        %v511 = vld [vmem:[%s265 + $0x1b8] sm:$0xff]
        %v512 = vld [vmem:[%s265 + $0x1c0] sm:$0xff]
        %v513 = vld [vmem:[%s265 + $0x1c8] sm:$0xff]
        %v514 = vld [vmem:[%s265 + $0x1d0] sm:$0xff]
        %v515 = vld [vmem:[%s265 + $0x1d8] sm:$0xff]
        %v516 = vld [vmem:[%s265 + $0x1e0] sm:$0xff]
        %v517 = vld [vmem:[%s265 + $0x1e8] sm:$0xff]
        %v518 = vld [vmem:[%s265 + $0x1f0] sm:$0xff]
        %v519 = vld [vmem:[%s265 + $0x1f8] sm:$0xff]
        %v520 = vld [vmem:[%s274] sm:$0xff]
        %v521 = vld [vmem:[%s274 + $0x8] sm:$0xff]
        %v522 = vld [vmem:[%s274 + $0x10] sm:$0xff]
        %v523 = vld [vmem:[%s274 + $0x18] sm:$0xff]
        %v524 = vld [vmem:[%s274 + $0x20] sm:$0xff]
        %v525 = vld [vmem:[%s274 + $0x28] sm:$0xff]
        %v526 = vld [vmem:[%s274 + $0x30] sm:$0xff]
        %v527 = vld [vmem:[%s274 + $0x38] sm:$0xff]
        %v528 = vld [vmem:[%s274 + $0x40] sm:$0xff]
        %v529 = vld [vmem:[%s274 + $0x48] sm:$0xff]
        %v530 = vld [vmem:[%s274 + $0x50] sm:$0xff]
        %v531 = vld [vmem:[%s274 + $0x58] sm:$0xff]
        %v532 = vld [vmem:[%s274 + $0x60] sm:$0xff]
        %v533 = vld [vmem:[%s274 + $0x68] sm:$0xff]
        %v534 = vld [vmem:[%s274 + $0x70] sm:$0xff]
        %v535 = vld [vmem:[%s274 + $0x78] sm:$0xff]
        %v536 = vld [vmem:[%s274 + $0x80] sm:$0xff]
        %v537 = vld [vmem:[%s274 + $0x88] sm:$0xff]
        %v538 = vld [vmem:[%s274 + $0x90] sm:$0xff]
        %v539 = vld [vmem:[%s274 + $0x98] sm:$0xff]
        %v540 = vld [vmem:[%s274 + $0xa0] sm:$0xff]
        %v541 = vld [vmem:[%s274 + $0xa8] sm:$0xff]
        %v542 = vld [vmem:[%s274 + $0xb0] sm:$0xff]
        %v543 = vld [vmem:[%s274 + $0xb8] sm:$0xff]
        %v544 = vld [vmem:[%s274 + $0xc0] sm:$0xff]
        %v545 = vld [vmem:[%s274 + $0xc8] sm:$0xff]
        %v546 = vld [vmem:[%s274 + $0xd0] sm:$0xff]
        %v547 = vld [vmem:[%s274 + $0xd8] sm:$0xff]
        %v548 = vld [vmem:[%s274 + $0xe0] sm:$0xff]
        %v549 = vld [vmem:[%s274 + $0xe8] sm:$0xff]
        %v550 = vld [vmem:[%s274 + $0xf0] sm:$0xff]
        %v551 = vld [vmem:[%s274 + $0xf8] sm:$0xff]
        %v552 = vld [vmem:[%s274 + $0x100] sm:$0xff]
        %v553 = vld [vmem:[%s274 + $0x108] sm:$0xff]
        %v554 = vld [vmem:[%s274 + $0x110] sm:$0xff]
        %v555 = vld [vmem:[%s274 + $0x118] sm:$0xff]
        %v556 = vld [vmem:[%s274 + $0x120] sm:$0xff]
        %v557 = vld [vmem:[%s274 + $0x128] sm:$0xff]
        %v558 = vld [vmem:[%s274 + $0x130] sm:$0xff]
        %v559 = vld [vmem:[%s274 + $0x138] sm:$0xff]
        %v560 = vld [vmem:[%s274 + $0x140] sm:$0xff]
        %v561 = vld [vmem:[%s274 + $0x148] sm:$0xff]
        %v562 = vld [vmem:[%s274 + $0x150] sm:$0xff]
        %v563 = vld [vmem:[%s274 + $0x158] sm:$0xff]
        %v564 = vld [vmem:[%s274 + $0x160] sm:$0xff]
        %v565 = vld [vmem:[%s274 + $0x168] sm:$0xff]
        %v566 = vld [vmem:[%s274 + $0x170] sm:$0xff]
        %v567 = vld [vmem:[%s274 + $0x178] sm:$0xff]
        %v568 = vld [vmem:[%s274 + $0x180] sm:$0xff]
        %v569 = vld [vmem:[%s274 + $0x188] sm:$0xff]
        %v570 = vld [vmem:[%s274 + $0x190] sm:$0xff]
        %v571 = vld [vmem:[%s274 + $0x198] sm:$0xff]
        %v572 = vld [vmem:[%s274 + $0x1a0] sm:$0xff]
        %v573 = vld [vmem:[%s274 + $0x1a8] sm:$0xff]
        %v574 = vld [vmem:[%s274 + $0x1b0] sm:$0xff]
        %v575 = vld [vmem:[%s274 + $0x1b8] sm:$0xff]
        %v576 = vld [vmem:[%s274 + $0x1c0] sm:$0xff]
        %v577 = vld [vmem:[%s274 + $0x1c8] sm:$0xff]
        %v578 = vld [vmem:[%s274 + $0x1d0] sm:$0xff]
        %v579 = vld [vmem:[%s274 + $0x1d8] sm:$0xff]
        %v580 = vld [vmem:[%s274 + $0x1e0] sm:$0xff]
        %v581 = vld [vmem:[%s274 + $0x1e8] sm:$0xff]
        %v582 = vld [vmem:[%s274 + $0x1f0] sm:$0xff]
        %v583 = vld [vmem:[%s274 + $0x1f8] sm:$0xff]
        %584 = vmatprep.subr.mxu0 %v551
        %585 = vmatpush1.xpose.msra.mxu0 %v550
        %586 = vmatprep.subr.mxu0 %v549
        %587 = vmatpush1.xpose.msra.mxu0 %v548
        %588 = vmatprep.subr.mxu0 %v547
        %589 = vmatpush1.xpose.msra.mxu0 %v546
        %590 = vmatprep.subr.mxu0 %v545
        %591 = vmatpush1.xpose.msra.mxu0 %v544
        %592 = vmatprep.subr.mxu0 %v543
        %593 = vmatpush1.xpose.msra.mxu0 %v542
        %594 = vmatprep.subr.mxu0 %v541
        %595 = vmatpush1.xpose.msra.mxu0 %v540
        %596 = vmatprep.subr.mxu0 %v539
        %597 = vmatpush1.xpose.msra.mxu0 %v538
        %598 = vmatprep.subr.mxu0 %v537
        %599 = vmatpush1.xpose.msra.mxu0 %v536
        %600 = vmatprep.subr.mxu0 %v535
        %601 = vmatpush1.xpose.msra.mxu0 %v534
        %602 = vmatprep.subr.mxu0 %v533
        %603 = vmatpush1.xpose.msra.mxu0 %v532
        %604 = vmatprep.subr.mxu0 %v531
        %605 = vmatpush1.xpose.msra.mxu0 %v530
        %606 = vmatprep.subr.mxu0 %v529
        %607 = vmatpush1.xpose.msra.mxu0 %v528
        %608 = vmatprep.subr.mxu0 %v527
        %609 = vmatpush1.xpose.msra.mxu0 %v526
        %610 = vmatprep.subr.mxu0 %v525
        %611 = vmatpush1.xpose.msra.mxu0 %v524
        %612 = vmatprep.subr.mxu0 %v523
        %613 = vmatpush1.xpose.msra.mxu0 %v522
        %614 = vmatprep.subr.mxu0 %v521
        %615 = vmatpush1.xpose.msra.mxu0 %v520
        %616 = vmatprep.subr.mxu0 %v583
        %617 = vmatpush2.xpose.msra.mxu0 %v582
        %618 = vmatprep.subr.mxu0 %v581
        %619 = vmatpush2.xpose.msra.mxu0 %v580
        %620 = vmatprep.subr.mxu0 %v579
        %621 = vmatpush2.xpose.msra.mxu0 %v578
        %622 = vmatprep.subr.mxu0 %v577
        %623 = vmatpush2.xpose.msra.mxu0 %v576
        %624 = vmatprep.subr.mxu0 %v575
        %625 = vmatpush2.xpose.msra.mxu0 %v574
        %626 = vmatprep.subr.mxu0 %v573
        %627 = vmatpush2.xpose.msra.mxu0 %v572
        %628 = vmatprep.subr.mxu0 %v571
        %629 = vmatpush2.xpose.msra.mxu0 %v570
        %630 = vmatprep.subr.mxu0 %v569
        %631 = vmatpush2.xpose.msra.mxu0 %v568
        %632 = vmatprep.subr.mxu0 %v567
        %633 = vmatpush2.xpose.msra.mxu0 %v566
        %634 = vmatprep.subr.mxu0 %v565
        %635 = vmatpush2.xpose.msra.mxu0 %v564
        %636 = vmatprep.subr.mxu0 %v563
        %637 = vmatpush2.xpose.msra.mxu0 %v562
        %638 = vmatprep.subr.mxu0 %v561
        %639 = vmatpush2.xpose.msra.mxu0 %v560
        %640 = vmatprep.subr.mxu0 %v559
        %641 = vmatpush2.xpose.msra.mxu0 %v558
        %642 = vmatprep.subr.mxu0 %v557
        %643 = vmatpush2.xpose.msra.mxu0 %v556
        %644 = vmatprep.subr.mxu0 %v555
        %645 = vmatpush2.xpose.msra.mxu0 %v554
        %646 = vmatprep.subr.mxu0 %v553
        %647 = vmatpush2.xpose.msra.mxu0 %v552
        %648 = vmatprep.mubr.f32.mxu0 %v457
        %649 = vmatmul.mubr.f32.gmra.mxu0 %v456
        %v650 = vpop.f32.mrf.mxu0
        %v651 = vadd.f32 0.0, %v650
        %v652 = vpop.f32.mrf.mxu0
        %v653 = vadd.f32 0.0, %v652
        %654 = vmatprep.mubr.f32.mxu0 %v459
        %655 = vmatmul.mubr.f32.gmra.mxu0 %v458
        %v656 = vpop.f32.mrf.mxu0
        %v657 = vadd.f32 0.0, %v656
        %v658 = vpop.f32.mrf.mxu0
        %v659 = vadd.f32 0.0, %v658
        %660 = vmatprep.mubr.f32.mxu0 %v461
        %661 = vmatmul.mubr.f32.gmra.mxu0 %v460
        %v662 = vpop.f32.mrf.mxu0
        %v663 = vadd.f32 0.0, %v662
        %v664 = vpop.f32.mrf.mxu0
        %v665 = vadd.f32 0.0, %v664
        %666 = vmatprep.mubr.f32.mxu0 %v463
        %667 = vmatmul.mubr.f32.gmra.mxu0 %v462
        %v668 = vpop.f32.mrf.mxu0
        %v669 = vadd.f32 0.0, %v668
        %v670 = vpop.f32.mrf.mxu0
        %v671 = vadd.f32 0.0, %v670
        %672 = vmatprep.mubr.f32.mxu0 %v465
        %673 = vmatmul.mubr.f32.gmra.mxu0 %v464
        %v674 = vpop.f32.mrf.mxu0
        %v675 = vadd.f32 0.0, %v674
        %v676 = vpop.f32.mrf.mxu0
        %v677 = vadd.f32 0.0, %v676
        %678 = vmatprep.mubr.f32.mxu0 %v467
        %679 = vmatmul.mubr.f32.gmra.mxu0 %v466
        %v680 = vpop.f32.mrf.mxu0
        %v681 = vadd.f32 0.0, %v680
        %v682 = vpop.f32.mrf.mxu0
        %v683 = vadd.f32 0.0, %v682
        %684 = vmatprep.mubr.f32.mxu0 %v469
        %685 = vmatmul.mubr.f32.gmra.mxu0 %v468
        %v686 = vpop.f32.mrf.mxu0
        %v687 = vadd.f32 0.0, %v686
        %v688 = vpop.f32.mrf.mxu0
        %v689 = vadd.f32 0.0, %v688
        %690 = vmatprep.mubr.f32.mxu0 %v471
        %691 = vmatmul.mubr.f32.gmra.mxu0 %v470
        %v692 = vpop.f32.mrf.mxu0
        %v693 = vadd.f32 0.0, %v692
        %v694 = vpop.f32.mrf.mxu0
        %v695 = vadd.f32 0.0, %v694
        %696 = vmatprep.mubr.f32.mxu0 %v473
        %697 = vmatmul.mubr.f32.gmra.mxu0 %v472
        %v698 = vpop.f32.mrf.mxu0
        %v699 = vadd.f32 0.0, %v698
        %v700 = vpop.f32.mrf.mxu0
        %v701 = vadd.f32 0.0, %v700
        %702 = vmatprep.mubr.f32.mxu0 %v475
        %703 = vmatmul.mubr.f32.gmra.mxu0 %v474
        %v704 = vpop.f32.mrf.mxu0
        %v705 = vadd.f32 0.0, %v704
        %v706 = vpop.f32.mrf.mxu0
        %v707 = vadd.f32 0.0, %v706
        %708 = vmatprep.mubr.f32.mxu0 %v477
        %709 = vmatmul.mubr.f32.gmra.mxu0 %v476
        %v710 = vpop.f32.mrf.mxu0
        %v711 = vadd.f32 0.0, %v710
        %v712 = vpop.f32.mrf.mxu0
        %v713 = vadd.f32 0.0, %v712
        %714 = vmatprep.mubr.f32.mxu0 %v479
        %715 = vmatmul.mubr.f32.gmra.mxu0 %v478
        %v716 = vpop.f32.mrf.mxu0
        %v717 = vadd.f32 0.0, %v716
        %v718 = vpop.f32.mrf.mxu0
        %v719 = vadd.f32 0.0, %v718
        %720 = vmatprep.mubr.f32.mxu0 %v481
        %721 = vmatmul.mubr.f32.gmra.mxu0 %v480
        %v722 = vpop.f32.mrf.mxu0
        %v723 = vadd.f32 0.0, %v722
        %v724 = vpop.f32.mrf.mxu0
        %v725 = vadd.f32 0.0, %v724
        %726 = vmatprep.mubr.f32.mxu0 %v483
        %727 = vmatmul.mubr.f32.gmra.mxu0 %v482
        %v728 = vpop.f32.mrf.mxu0
        %v729 = vadd.f32 0.0, %v728
        %v730 = vpop.f32.mrf.mxu0
        %v731 = vadd.f32 0.0, %v730
        %732 = vmatprep.mubr.f32.mxu0 %v485
        %733 = vmatmul.mubr.f32.gmra.mxu0 %v484
        %v734 = vpop.f32.mrf.mxu0
        %v735 = vadd.f32 0.0, %v734
        %v736 = vpop.f32.mrf.mxu0
        %v737 = vadd.f32 0.0, %v736
        %738 = vmatprep.mubr.f32.mxu0 %v487
        %739 = vmatmul.mubr.f32.gmra.mxu0 %v486
        %v740 = vpop.f32.mrf.mxu0
        %v741 = vadd.f32 0.0, %v740
        %v742 = vpop.f32.mrf.mxu0
        %v743 = vadd.f32 0.0, %v742
        %744 = vmatprep.mubr.f32.mxu0 %v489
        %745 = vmatmul.mubr.f32.gmra.mxu0 %v488
        %v746 = vpop.f32.mrf.mxu0
        %v747 = vadd.f32 0.0, %v746
        %v748 = vpop.f32.mrf.mxu0
        %v749 = vadd.f32 0.0, %v748
        %750 = vmatprep.mubr.f32.mxu0 %v491
        %751 = vmatmul.mubr.f32.gmra.mxu0 %v490
        %v752 = vpop.f32.mrf.mxu0
        %v753 = vadd.f32 0.0, %v752
        %v754 = vpop.f32.mrf.mxu0
        %v755 = vadd.f32 0.0, %v754
        %756 = vmatprep.mubr.f32.mxu0 %v493
        %757 = vmatmul.mubr.f32.gmra.mxu0 %v492
        %v758 = vpop.f32.mrf.mxu0
        %v759 = vadd.f32 0.0, %v758
        %v760 = vpop.f32.mrf.mxu0
        %v761 = vadd.f32 0.0, %v760
        %762 = vmatprep.mubr.f32.mxu0 %v495
        %763 = vmatmul.mubr.f32.gmra.mxu0 %v494
        %v764 = vpop.f32.mrf.mxu0
        %v765 = vadd.f32 0.0, %v764
        %v766 = vpop.f32.mrf.mxu0
        %v767 = vadd.f32 0.0, %v766
        %768 = vmatprep.mubr.f32.mxu0 %v497
        %769 = vmatmul.mubr.f32.gmra.mxu0 %v496
        %v770 = vpop.f32.mrf.mxu0
        %v771 = vadd.f32 0.0, %v770
        %v772 = vpop.f32.mrf.mxu0
        %v773 = vadd.f32 0.0, %v772
        %774 = vmatprep.mubr.f32.mxu0 %v499
        %775 = vmatmul.mubr.f32.gmra.mxu0 %v498
        %v776 = vpop.f32.mrf.mxu0
        %v777 = vadd.f32 0.0, %v776
        %v778 = vpop.f32.mrf.mxu0
        %v779 = vadd.f32 0.0, %v778
        %780 = vmatprep.mubr.f32.mxu0 %v501
        %781 = vmatmul.mubr.f32.gmra.mxu0 %v500
        %v782 = vpop.f32.mrf.mxu0
        %v783 = vadd.f32 0.0, %v782
        %v784 = vpop.f32.mrf.mxu0
        %v785 = vadd.f32 0.0, %v784
        %786 = vmatprep.mubr.f32.mxu0 %v503
        %787 = vmatmul.mubr.f32.gmra.mxu0 %v502
        %v788 = vpop.f32.mrf.mxu0
        %v789 = vadd.f32 0.0, %v788
        %v790 = vpop.f32.mrf.mxu0
        %v791 = vadd.f32 0.0, %v790
        %792 = vmatprep.mubr.f32.mxu0 %v505
        %793 = vmatmul.mubr.f32.gmra.mxu0 %v504
        %v794 = vpop.f32.mrf.mxu0
        %v795 = vadd.f32 0.0, %v794
        %v796 = vpop.f32.mrf.mxu0
        %v797 = vadd.f32 0.0, %v796
        %798 = vmatprep.mubr.f32.mxu0 %v507
        %799 = vmatmul.mubr.f32.gmra.mxu0 %v506
        %v800 = vpop.f32.mrf.mxu0
        %v801 = vadd.f32 0.0, %v800
        %v802 = vpop.f32.mrf.mxu0
        %v803 = vadd.f32 0.0, %v802
        %804 = vmatprep.mubr.f32.mxu0 %v509
        %805 = vmatmul.mubr.f32.gmra.mxu0 %v508
        %v806 = vpop.f32.mrf.mxu0
        %v807 = vadd.f32 0.0, %v806
        %v808 = vpop.f32.mrf.mxu0
        %v809 = vadd.f32 0.0, %v808
        %810 = vmatprep.mubr.f32.mxu0 %v511
        %811 = vmatmul.mubr.f32.gmra.mxu0 %v510
        %v812 = vpop.f32.mrf.mxu0
        %v813 = vadd.f32 0.0, %v812
        %v814 = vpop.f32.mrf.mxu0
        %v815 = vadd.f32 0.0, %v814
        %816 = vmatprep.mubr.f32.mxu0 %v513
        %817 = vmatmul.mubr.f32.gmra.mxu0 %v512
        %v818 = vpop.f32.mrf.mxu0
        %v819 = vadd.f32 0.0, %v818
        %v820 = vpop.f32.mrf.mxu0
        %v821 = vadd.f32 0.0, %v820
        %822 = vmatprep.mubr.f32.mxu0 %v515
        %823 = vmatmul.mubr.f32.gmra.mxu0 %v514
        %v824 = vpop.f32.mrf.mxu0
        %v825 = vadd.f32 0.0, %v824
        %v826 = vpop.f32.mrf.mxu0
        %v827 = vadd.f32 0.0, %v826
        %828 = vmatprep.mubr.f32.mxu0 %v517
        %829 = vmatmul.mubr.f32.gmra.mxu0 %v516
        %v830 = vpop.f32.mrf.mxu0
        %v831 = vadd.f32 0.0, %v830
        %v832 = vpop.f32.mrf.mxu0
        %v833 = vadd.f32 0.0, %v832
        %834 = vmatprep.mubr.f32.mxu0 %v519
        %835 = vmatmul.mubr.f32.gmra.mxu0 %v518
        %v836 = vpop.f32.mrf.mxu0
        %v837 = vadd.f32 0.0, %v836
        %v838 = vpop.f32.mrf.mxu0
        %v839 = vadd.f32 0.0, %v838
        %840 = vdwg.mxu0
        %v841 = vadd.f32 %v392, %v651
        %v842 = vadd.f32 %v393, %v653
        %v843 = vadd.f32 %v394, %v657
        %v844 = vadd.f32 %v395, %v659
        %v845 = vadd.f32 %v396, %v663
        %v846 = vadd.f32 %v397, %v665
        %v847 = vadd.f32 %v398, %v669
        %v848 = vadd.f32 %v399, %v671
        %v849 = vadd.f32 %v400, %v675
        %v850 = vadd.f32 %v401, %v677
        %v851 = vadd.f32 %v402, %v681
        %v852 = vadd.f32 %v403, %v683
        %v853 = vadd.f32 %v404, %v687
        %v854 = vadd.f32 %v405, %v689
        %v855 = vadd.f32 %v406, %v693
        %v856 = vadd.f32 %v407, %v695
        %v857 = vadd.f32 %v408, %v699
        %v858 = vadd.f32 %v409, %v701
        %v859 = vadd.f32 %v410, %v705
        %v860 = vadd.f32 %v411, %v707
        %v861 = vadd.f32 %v412, %v711
        %v862 = vadd.f32 %v413, %v713
        %v863 = vadd.f32 %v414, %v717
        %v864 = vadd.f32 %v415, %v719
        %v865 = vadd.f32 %v416, %v723
        %v866 = vadd.f32 %v417, %v725
        %v867 = vadd.f32 %v418, %v729
        %v868 = vadd.f32 %v419, %v731
        %v869 = vadd.f32 %v420, %v735
        %v870 = vadd.f32 %v421, %v737
        %v871 = vadd.f32 %v422, %v741
        %v872 = vadd.f32 %v423, %v743
        %v873 = vadd.f32 %v424, %v747
        %v874 = vadd.f32 %v425, %v749
        %v875 = vadd.f32 %v426, %v753
        %v876 = vadd.f32 %v427, %v755
        %v877 = vadd.f32 %v428, %v759
        %v878 = vadd.f32 %v429, %v761
        %v879 = vadd.f32 %v430, %v765
        %v880 = vadd.f32 %v431, %v767
        %v881 = vadd.f32 %v432, %v771
        %v882 = vadd.f32 %v433, %v773
        %v883 = vadd.f32 %v434, %v777
        %v884 = vadd.f32 %v435, %v779
        %v885 = vadd.f32 %v436, %v783
        %v886 = vadd.f32 %v437, %v785
        %v887 = vadd.f32 %v438, %v789
        %v888 = vadd.f32 %v439, %v791
        %v889 = vadd.f32 %v440, %v795
        %v890 = vadd.f32 %v441, %v797
        %v891 = vadd.f32 %v442, %v801
        %v892 = vadd.f32 %v443, %v803
        %v893 = vadd.f32 %v444, %v807
        %v894 = vadd.f32 %v445, %v809
        %v895 = vadd.f32 %v446, %v813
        %v896 = vadd.f32 %v447, %v815
        %v897 = vadd.f32 %v448, %v819
        %v898 = vadd.f32 %v449, %v821
        %v899 = vadd.f32 %v450, %v825
        %v900 = vadd.f32 %v451, %v827
        %v901 = vadd.f32 %v452, %v831
        %v902 = vadd.f32 %v453, %v833
        %v903 = vadd.f32 %v454, %v837
        %v904 = vadd.f32 %v455, %v839
        %905 = vst [vmem:[#allocation2] sm:$0xff] %v841
        %906 = vst [vmem:[#allocation2 + $0x8] sm:$0xff] %v842
        %907 = vst [vmem:[#allocation2 + $0x10] sm:$0xff] %v843
        %908 = vst [vmem:[#allocation2 + $0x18] sm:$0xff] %v844
        %909 = vst [vmem:[#allocation2 + $0x20] sm:$0xff] %v845
        %910 = vst [vmem:[#allocation2 + $0x28] sm:$0xff] %v846
        %911 = vst [vmem:[#allocation2 + $0x30] sm:$0xff] %v847
        %912 = vst [vmem:[#allocation2 + $0x38] sm:$0xff] %v848
        %913 = vst [vmem:[#allocation2 + $0x40] sm:$0xff] %v849
        %914 = vst [vmem:[#allocation2 + $0x48] sm:$0xff] %v850
        %915 = vst [vmem:[#allocation2 + $0x50] sm:$0xff] %v851
        %916 = vst [vmem:[#allocation2 + $0x58] sm:$0xff] %v852
        %917 = vst [vmem:[#allocation2 + $0x60] sm:$0xff] %v853
        %918 = vst [vmem:[#allocation2 + $0x68] sm:$0xff] %v854
        %919 = vst [vmem:[#allocation2 + $0x70] sm:$0xff] %v855
        %920 = vst [vmem:[#allocation2 + $0x78] sm:$0xff] %v856
        %921 = vst [vmem:[#allocation2 + $0x80] sm:$0xff] %v857
        %922 = vst [vmem:[#allocation2 + $0x88] sm:$0xff] %v858
        %923 = vst [vmem:[#allocation2 + $0x90] sm:$0xff] %v859
        %924 = vst [vmem:[#allocation2 + $0x98] sm:$0xff] %v860
        %925 = vst [vmem:[#allocation2 + $0xa0] sm:$0xff] %v861
        %926 = vst [vmem:[#allocation2 + $0xa8] sm:$0xff] %v862
        %927 = vst [vmem:[#allocation2 + $0xb0] sm:$0xff] %v863
        %928 = vst [vmem:[#allocation2 + $0xb8] sm:$0xff] %v864
        %929 = vst [vmem:[#allocation2 + $0xc0] sm:$0xff] %v865
        %930 = vst [vmem:[#allocation2 + $0xc8] sm:$0xff] %v866
        %931 = vst [vmem:[#allocation2 + $0xd0] sm:$0xff] %v867
        %932 = vst [vmem:[#allocation2 + $0xd8] sm:$0xff] %v868
        %933 = vst [vmem:[#allocation2 + $0xe0] sm:$0xff] %v869
        %934 = vst [vmem:[#allocation2 + $0xe8] sm:$0xff] %v870
        %935 = vst [vmem:[#allocation2 + $0xf0] sm:$0xff] %v871
        %936 = vst [vmem:[#allocation2 + $0xf8] sm:$0xff] %v872
        %937 = vst [vmem:[#allocation2 + $0x100] sm:$0xff] %v873
        %938 = vst [vmem:[#allocation2 + $0x108] sm:$0xff] %v874
        %939 = vst [vmem:[#allocation2 + $0x110] sm:$0xff] %v875
        %940 = vst [vmem:[#allocation2 + $0x118] sm:$0xff] %v876
        %941 = vst [vmem:[#allocation2 + $0x120] sm:$0xff] %v877
        %942 = vst [vmem:[#allocation2 + $0x128] sm:$0xff] %v878
        %943 = vst [vmem:[#allocation2 + $0x130] sm:$0xff] %v879
        %944 = vst [vmem:[#allocation2 + $0x138] sm:$0xff] %v880
        %945 = vst [vmem:[#allocation2 + $0x140] sm:$0xff] %v881
        %946 = vst [vmem:[#allocation2 + $0x148] sm:$0xff] %v882
        %947 = vst [vmem:[#allocation2 + $0x150] sm:$0xff] %v883
        %948 = vst [vmem:[#allocation2 + $0x158] sm:$0xff] %v884
        %949 = vst [vmem:[#allocation2 + $0x160] sm:$0xff] %v885
        %950 = vst [vmem:[#allocation2 + $0x168] sm:$0xff] %v886
        %951 = vst [vmem:[#allocation2 + $0x170] sm:$0xff] %v887
        %952 = vst [vmem:[#allocation2 + $0x178] sm:$0xff] %v888
        %953 = vst [vmem:[#allocation2 + $0x180] sm:$0xff] %v889
        %954 = vst [vmem:[#allocation2 + $0x188] sm:$0xff] %v890
        %955 = vst [vmem:[#allocation2 + $0x190] sm:$0xff] %v891
        %956 = vst [vmem:[#allocation2 + $0x198] sm:$0xff] %v892
        %957 = vst [vmem:[#allocation2 + $0x1a0] sm:$0xff] %v893
        %958 = vst [vmem:[#allocation2 + $0x1a8] sm:$0xff] %v894
        %959 = vst [vmem:[#allocation2 + $0x1b0] sm:$0xff] %v895
        %960 = vst [vmem:[#allocation2 + $0x1b8] sm:$0xff] %v896
        %961 = vst [vmem:[#allocation2 + $0x1c0] sm:$0xff] %v897
        %962 = vst [vmem:[#allocation2 + $0x1c8] sm:$0xff] %v898
        %963 = vst [vmem:[#allocation2 + $0x1d0] sm:$0xff] %v899
        %964 = vst [vmem:[#allocation2 + $0x1d8] sm:$0xff] %v900
        %965 = vst [vmem:[#allocation2 + $0x1e0] sm:$0xff] %v901
        %966 = vst [vmem:[#allocation2 + $0x1e8] sm:$0xff] %v902
        %967 = vst [vmem:[#allocation2 + $0x1f0] sm:$0xff] %v903
        %968 = vst [vmem:[#allocation2 + $0x1f8] sm:$0xff] %v904
        // Predicated region
        $region49: #{tpu_custom_call.1} parent=31 // pred_check
          %p969 = pneg %p324
        $region50: #{tpu_custom_call.1} parent=31 // pred_check_branch
          %971 = sbr.rel (%p969) target = $region52
        $region51: #{tpu_custom_call.1} parent=31 // pred_region
          %v972 = vld [vmem:[#allocation2] sm:$0xff]
          %v973 = vld [vmem:[#allocation2 + $0x8] sm:$0xff]
          %v974 = vld [vmem:[#allocation2 + $0x10] sm:$0xff]
          %v975 = vld [vmem:[#allocation2 + $0x18] sm:$0xff]
          %v976 = vld [vmem:[#allocation2 + $0x20] sm:$0xff]
          %v977 = vld [vmem:[#allocation2 + $0x28] sm:$0xff]
          %v978 = vld [vmem:[#allocation2 + $0x30] sm:$0xff]
          %v979 = vld [vmem:[#allocation2 + $0x38] sm:$0xff]
          %v980 = vld [vmem:[#allocation2 + $0x40] sm:$0xff]
          %v981 = vld [vmem:[#allocation2 + $0x48] sm:$0xff]
          %v982 = vld [vmem:[#allocation2 + $0x50] sm:$0xff]
          %v983 = vld [vmem:[#allocation2 + $0x58] sm:$0xff]
          %v984 = vld [vmem:[#allocation2 + $0x60] sm:$0xff]
          %v985 = vld [vmem:[#allocation2 + $0x68] sm:$0xff]
          %v986 = vld [vmem:[#allocation2 + $0x70] sm:$0xff]
          %v987 = vld [vmem:[#allocation2 + $0x78] sm:$0xff]
          %v988 = vld [vmem:[#allocation2 + $0x80] sm:$0xff]
          %v989 = vld [vmem:[#allocation2 + $0x88] sm:$0xff]
          %v990 = vld [vmem:[#allocation2 + $0x90] sm:$0xff]
          %v991 = vld [vmem:[#allocation2 + $0x98] sm:$0xff]
          %v992 = vld [vmem:[#allocation2 + $0xa0] sm:$0xff]
          %v993 = vld [vmem:[#allocation2 + $0xa8] sm:$0xff]
          %v994 = vld [vmem:[#allocation2 + $0xb0] sm:$0xff]
          %v995 = vld [vmem:[#allocation2 + $0xb8] sm:$0xff]
          %v996 = vld [vmem:[#allocation2 + $0xc0] sm:$0xff]
          %v997 = vld [vmem:[#allocation2 + $0xc8] sm:$0xff]
          %v998 = vld [vmem:[#allocation2 + $0xd0] sm:$0xff]
          %v999 = vld [vmem:[#allocation2 + $0xd8] sm:$0xff]
          %v1000 = vld [vmem:[#allocation2 + $0xe0] sm:$0xff]
          %v1001 = vld [vmem:[#allocation2 + $0xe8] sm:$0xff]
          %v1002 = vld [vmem:[#allocation2 + $0xf0] sm:$0xff]
          %v1003 = vld [vmem:[#allocation2 + $0xf8] sm:$0xff]
          %v1004 = vld [vmem:[#allocation2 + $0x100] sm:$0xff]
          %v1005 = vld [vmem:[#allocation2 + $0x108] sm:$0xff]
          %v1006 = vld [vmem:[#allocation2 + $0x110] sm:$0xff]
          %v1007 = vld [vmem:[#allocation2 + $0x118] sm:$0xff]
          %v1008 = vld [vmem:[#allocation2 + $0x120] sm:$0xff]
          %v1009 = vld [vmem:[#allocation2 + $0x128] sm:$0xff]
          %v1010 = vld [vmem:[#allocation2 + $0x130] sm:$0xff]
          %v1011 = vld [vmem:[#allocation2 + $0x138] sm:$0xff]
          %v1012 = vld [vmem:[#allocation2 + $0x140] sm:$0xff]
          %v1013 = vld [vmem:[#allocation2 + $0x148] sm:$0xff]
          %v1014 = vld [vmem:[#allocation2 + $0x150] sm:$0xff]
          %v1015 = vld [vmem:[#allocation2 + $0x158] sm:$0xff]
          %v1016 = vld [vmem:[#allocation2 + $0x160] sm:$0xff]
          %v1017 = vld [vmem:[#allocation2 + $0x168] sm:$0xff]
          %v1018 = vld [vmem:[#allocation2 + $0x170] sm:$0xff]
          %v1019 = vld [vmem:[#allocation2 + $0x178] sm:$0xff]
          %v1020 = vld [vmem:[#allocation2 + $0x180] sm:$0xff]
          %v1021 = vld [vmem:[#allocation2 + $0x188] sm:$0xff]
          %v1022 = vld [vmem:[#allocation2 + $0x190] sm:$0xff]
          %v1023 = vld [vmem:[#allocation2 + $0x198] sm:$0xff]
          %v1024 = vld [vmem:[#allocation2 + $0x1a0] sm:$0xff]
          %v1025 = vld [vmem:[#allocation2 + $0x1a8] sm:$0xff]
          %v1026 = vld [vmem:[#allocation2 + $0x1b0] sm:$0xff]
          %v1027 = vld [vmem:[#allocation2 + $0x1b8] sm:$0xff]
          %v1028 = vld [vmem:[#allocation2 + $0x1c0] sm:$0xff]
          %v1029 = vld [vmem:[#allocation2 + $0x1c8] sm:$0xff]
          %v1030 = vld [vmem:[#allocation2 + $0x1d0] sm:$0xff]
          %v1031 = vld [vmem:[#allocation2 + $0x1d8] sm:$0xff]
          %v1032 = vld [vmem:[#allocation2 + $0x1e0] sm:$0xff]
          %v1033 = vld [vmem:[#allocation2 + $0x1e8] sm:$0xff]
          %v1034 = vld [vmem:[#allocation2 + $0x1f0] sm:$0xff]
          %v1035 = vld [vmem:[#allocation2 + $0x1f8] sm:$0xff]
          %v1036 = vld [vmem:[%s283] sm:$0x3]
          %v1038 = vlaneseq
          %v1039 = vshrl.u32 %v1038, 7
          %v1040 = vsub.s32 0, %v1039
          %v1041 = vrot.slane %v1036, %v1040
          %v1042 = vlaneseq
          %v1043 = vshrl.u32 %v1042, 7
          %v1044 = vsub.s32 1, %v1043
          %v1045 = vrot.slane %v1036, %v1044
          %v1048 = vadd.f32 %v972, %v1041
          %v1049 = vadd.f32 %v973, %v1045
          %v1050 = vadd.f32 %v974, %v1041
          %v1051 = vadd.f32 %v975, %v1045
          %v1052 = vadd.f32 %v976, %v1041
          %v1053 = vadd.f32 %v977, %v1045
          %v1054 = vadd.f32 %v978, %v1041
          %v1055 = vadd.f32 %v979, %v1045
          %v1056 = vadd.f32 %v980, %v1041
          %v1057 = vadd.f32 %v981, %v1045
          %v1058 = vadd.f32 %v982, %v1041
          %v1059 = vadd.f32 %v983, %v1045
          %v1060 = vadd.f32 %v984, %v1041
          %v1061 = vadd.f32 %v985, %v1045
          %v1062 = vadd.f32 %v986, %v1041
          %v1063 = vadd.f32 %v987, %v1045
          %v1064 = vadd.f32 %v988, %v1041
          %v1065 = vadd.f32 %v989, %v1045
          %v1066 = vadd.f32 %v990, %v1041
          %v1067 = vadd.f32 %v991, %v1045
          %v1068 = vadd.f32 %v992, %v1041
          %v1069 = vadd.f32 %v993, %v1045
          %v1070 = vadd.f32 %v994, %v1041
          %v1071 = vadd.f32 %v995, %v1045
          %v1072 = vadd.f32 %v996, %v1041
          %v1073 = vadd.f32 %v997, %v1045
          %v1074 = vadd.f32 %v998, %v1041
          %v1075 = vadd.f32 %v999, %v1045
          %v1076 = vadd.f32 %v1000, %v1041
          %v1077 = vadd.f32 %v1001, %v1045
          %v1078 = vadd.f32 %v1002, %v1041
          %v1079 = vadd.f32 %v1003, %v1045
          %v1080 = vadd.f32 %v1004, %v1041
          %v1081 = vadd.f32 %v1005, %v1045
          %v1082 = vadd.f32 %v1006, %v1041
          %v1083 = vadd.f32 %v1007, %v1045
          %v1084 = vadd.f32 %v1008, %v1041
          %v1085 = vadd.f32 %v1009, %v1045
          %v1086 = vadd.f32 %v1010, %v1041
          %v1087 = vadd.f32 %v1011, %v1045
          %v1088 = vadd.f32 %v1012, %v1041
          %v1089 = vadd.f32 %v1013, %v1045
          %v1090 = vadd.f32 %v1014, %v1041
          %v1091 = vadd.f32 %v1015, %v1045
          %v1092 = vadd.f32 %v1016, %v1041
          %v1093 = vadd.f32 %v1017, %v1045
          %v1094 = vadd.f32 %v1018, %v1041
          %v1095 = vadd.f32 %v1019, %v1045
          %v1096 = vadd.f32 %v1020, %v1041
          %v1097 = vadd.f32 %v1021, %v1045
          %v1098 = vadd.f32 %v1022, %v1041
          %v1099 = vadd.f32 %v1023, %v1045
          %v1100 = vadd.f32 %v1024, %v1041
          %v1101 = vadd.f32 %v1025, %v1045
          %v1102 = vadd.f32 %v1026, %v1041
          %v1103 = vadd.f32 %v1027, %v1045
          %v1104 = vadd.f32 %v1028, %v1041
          %v1105 = vadd.f32 %v1029, %v1045
          %v1106 = vadd.f32 %v1030, %v1041
          %v1107 = vadd.f32 %v1031, %v1045
          %v1108 = vadd.f32 %v1032, %v1041
          %v1109 = vadd.f32 %v1033, %v1045
          %v1110 = vadd.f32 %v1034, %v1041
          %v1111 = vadd.f32 %v1035, %v1045
          %1112 = vst [vmem:[%s315] sm:$0xff] %v1048
          %1113 = vst [vmem:[%s315 + $0x8] sm:$0xff] %v1049
          %1114 = vst [vmem:[%s315 + $0x10] sm:$0xff] %v1050
          %1115 = vst [vmem:[%s315 + $0x18] sm:$0xff] %v1051
          %1116 = vst [vmem:[%s315 + $0x20] sm:$0xff] %v1052
          %1117 = vst [vmem:[%s315 + $0x28] sm:$0xff] %v1053
          %1118 = vst [vmem:[%s315 + $0x30] sm:$0xff] %v1054
          %1119 = vst [vmem:[%s315 + $0x38] sm:$0xff] %v1055
          %1120 = vst [vmem:[%s315 + $0x40] sm:$0xff] %v1056
          %1121 = vst [vmem:[%s315 + $0x48] sm:$0xff] %v1057
          %1122 = vst [vmem:[%s315 + $0x50] sm:$0xff] %v1058
          %1123 = vst [vmem:[%s315 + $0x58] sm:$0xff] %v1059
          %1124 = vst [vmem:[%s315 + $0x60] sm:$0xff] %v1060
          %1125 = vst [vmem:[%s315 + $0x68] sm:$0xff] %v1061
          %1126 = vst [vmem:[%s315 + $0x70] sm:$0xff] %v1062
          %1127 = vst [vmem:[%s315 + $0x78] sm:$0xff] %v1063
          %1128 = vst [vmem:[%s315 + $0x80] sm:$0xff] %v1064
          %1129 = vst [vmem:[%s315 + $0x88] sm:$0xff] %v1065
          %1130 = vst [vmem:[%s315 + $0x90] sm:$0xff] %v1066
          %1131 = vst [vmem:[%s315 + $0x98] sm:$0xff] %v1067
          %1132 = vst [vmem:[%s315 + $0xa0] sm:$0xff] %v1068
          %1133 = vst [vmem:[%s315 + $0xa8] sm:$0xff] %v1069
          %1134 = vst [vmem:[%s315 + $0xb0] sm:$0xff] %v1070
          %1135 = vst [vmem:[%s315 + $0xb8] sm:$0xff] %v1071
          %1136 = vst [vmem:[%s315 + $0xc0] sm:$0xff] %v1072
          %1137 = vst [vmem:[%s315 + $0xc8] sm:$0xff] %v1073
          %1138 = vst [vmem:[%s315 + $0xd0] sm:$0xff] %v1074
          %1139 = vst [vmem:[%s315 + $0xd8] sm:$0xff] %v1075
          %1140 = vst [vmem:[%s315 + $0xe0] sm:$0xff] %v1076
          %1141 = vst [vmem:[%s315 + $0xe8] sm:$0xff] %v1077
          %1142 = vst [vmem:[%s315 + $0xf0] sm:$0xff] %v1078
          %1143 = vst [vmem:[%s315 + $0xf8] sm:$0xff] %v1079
          %1144 = vst [vmem:[%s315 + $0x100] sm:$0xff] %v1080
          %1145 = vst [vmem:[%s315 + $0x108] sm:$0xff] %v1081
          %1146 = vst [vmem:[%s315 + $0x110] sm:$0xff] %v1082
          %1147 = vst [vmem:[%s315 + $0x118] sm:$0xff] %v1083
          %1148 = vst [vmem:[%s315 + $0x120] sm:$0xff] %v1084
          %1149 = vst [vmem:[%s315 + $0x128] sm:$0xff] %v1085
          %1150 = vst [vmem:[%s315 + $0x130] sm:$0xff] %v1086
          %1151 = vst [vmem:[%s315 + $0x138] sm:$0xff] %v1087
          %1152 = vst [vmem:[%s315 + $0x140] sm:$0xff] %v1088
          %1153 = vst [vmem:[%s315 + $0x148] sm:$0xff] %v1089
          %1154 = vst [vmem:[%s315 + $0x150] sm:$0xff] %v1090
          %1155 = vst [vmem:[%s315 + $0x158] sm:$0xff] %v1091
          %1156 = vst [vmem:[%s315 + $0x160] sm:$0xff] %v1092
          %1157 = vst [vmem:[%s315 + $0x168] sm:$0xff] %v1093
          %1158 = vst [vmem:[%s315 + $0x170] sm:$0xff] %v1094
          %1159 = vst [vmem:[%s315 + $0x178] sm:$0xff] %v1095
          %1160 = vst [vmem:[%s315 + $0x180] sm:$0xff] %v1096
          %1161 = vst [vmem:[%s315 + $0x188] sm:$0xff] %v1097
          %1162 = vst [vmem:[%s315 + $0x190] sm:$0xff] %v1098
          %1163 = vst [vmem:[%s315 + $0x198] sm:$0xff] %v1099
          %1164 = vst [vmem:[%s315 + $0x1a0] sm:$0xff] %v1100
          %1165 = vst [vmem:[%s315 + $0x1a8] sm:$0xff] %v1101
          %1166 = vst [vmem:[%s315 + $0x1b0] sm:$0xff] %v1102
          %1167 = vst [vmem:[%s315 + $0x1b8] sm:$0xff] %v1103
          %1168 = vst [vmem:[%s315 + $0x1c0] sm:$0xff] %v1104
          %1169 = vst [vmem:[%s315 + $0x1c8] sm:$0xff] %v1105
          %1170 = vst [vmem:[%s315 + $0x1d0] sm:$0xff] %v1106
          %1171 = vst [vmem:[%s315 + $0x1d8] sm:$0xff] %v1107
          %1172 = vst [vmem:[%s315 + $0x1e0] sm:$0xff] %v1108
          %1173 = vst [vmem:[%s315 + $0x1e8] sm:$0xff] %v1109
          %1174 = vst [vmem:[%s315 + $0x1f0] sm:$0xff] %v1110
          %1175 = vst [vmem:[%s315 + $0x1f8] sm:$0xff] %v1111
        $region52: #{tpu_custom_call.1} parent=31 // pred_fallthru
          _
        %s1176 = sand.u32 %s149, 1
        %s1177 = scalar_lea.sflag [#allocation5], %s1176
        %s1178 = sand.u32 %s149, 1
        %s1179 = smul.addr %s1178, 512
        %s1180 = scalar_lea.vmem [#allocation9], %s1179
        // Predicated region
        $region53: #{tpu_custom_call.1} parent=31 // pred_check
          %p1181 = pneg %p159
        $region54: #{tpu_custom_call.1} parent=31 // pred_check_branch
          %1183 = sbr.rel (%p1181) target = $region56
        $region55: #{tpu_custom_call.1} parent=31 // pred_region
          %s1184 = sadd.s32 %s29, %s31
          %s1185 = smul.u32 32, %s30
          %s1186 = smul.u32 2, %s1184
          %s1188 = ssub.s32 8192, 8192
          %1189 = vsyncadd %s1177, %s1188
          %s1190 = smul.addr %s1185, 6
          %s1191 = sadd.s32 %s1186, %s1190
          %s1192 = smul.addr %s1191, 128
          %s1193 = scalar_lea.hbm %s3, %s1192
          %s1194 = sshll.u32 %s1180, 4
          %s1195 = int_to_ptr.vmem [resolvable:$true] %s1194
          %1200 = dma.vmem_to_hbm [thread:$0]  %s1195, 8192, %s1193, %s1177, 256, 768, 16
        $region56: #{tpu_custom_call.1} parent=31 // pred_fallthru
          _
      $region32: #{tpu_custom_call.1} parent=5 // pred_fallthru
        _
      %p1201 = scmp.le.s32.totalorder 2, %s18
      // Predicated region
      $region57: #{tpu_custom_call.1} parent=5 // pred_check
        %p1202 = pneg %p1201
      $region58: #{tpu_custom_call.1} parent=5 // pred_check_branch
        %1204 = sbr.rel (%p1202) target = $region60
      $region59: #{tpu_custom_call.1} parent=5 // pred_region
        %s1205 = ssub.s32 %s18, 2
        // Predicated region
        $region61: #{tpu_custom_call.1} parent=59 // pred_check
          %p1206 = pneg %p165
        $region62: #{tpu_custom_call.1} parent=59 // pred_check_branch
          %1208 = sbr.rel (%p1206) target = $region64
        $region63: #{tpu_custom_call.1} parent=59 // pred_region
          %s1209 = sand.u32 %s150, 1
          %s1210 = scalar_lea.sflag [#allocation5], %s1209
          %s1211 = sand.u32 %s150, 1
          %s1212 = smul.addr %s1211, 512
          %s1213 = scalar_lea.vmem [#allocation9], %s1212
          %1214 = dma.done %s1210, 8192
        $region64: #{tpu_custom_call.1} parent=59 // pred_fallthru
          _
      $region60: #{tpu_custom_call.1} parent=5 // pred_fallthru
        _
    $region6: #{tpu_custom_call.1} parent=1 // loop_footer
      %s22 = sadd.s32 1, %s18
    $region7: #{tpu_custom_call.1} parent=1 // loop_footer_branch
      %17 = sbr.rel target = $region3
    $region8: #{tpu_custom_call.1} parent=1 // loop_exit
      _
    %1215 = vsyncpa [#allocation4], 1
    %s1216 = scalar_lea.sflag [#allocation4], 1
    %1217 = vsyncpa %s1216, 1
    %1218 = vsyncpa [#allocation7], 1
    %s1219 = scalar_lea.sflag [#allocation7], 1
    %1220 = vsyncpa %s1219, 1
    %1221 = vsyncpa [#allocation5], 1
    %s1222 = scalar_lea.sflag [#allocation5], 1
    %1223 = vsyncpa %s1222, 1

</llo_original>
